<compile_context>
chip_gen: v5e
topology: v5e:2x2
jax: 0.10.0
libtpu: 0.0.40
codegen_flags: <defaults>
</compile_context>

<pallas_src>
import math

import jax
import jax.numpy as jnp
from jax.experimental import pallas as pl
from jax.experimental.pallas import tpu as pltpu

# ---------------- small BERT config (consistent with the module) -------------
VOCAB_SIZE   = 100
HIDDEN       = 32
NUM_LAYERS   = 2
NUM_HEADS    = 4
HEAD_DIM     = HIDDEN // NUM_HEADS
INTERMEDIATE = 64
MAX_POS      = 64
TYPE_VOCAB   = 2
LN_EPS       = 1e-12
OUT_PAD      = 128            # lane-dense epilogue; real logits live in lanes 0..3

BATCH = 2
SEQ   = 8


# ============================ fused forward kernel ===========================
def _bert_mrc_kernel(ids_ref, tt_ref, amask_ref,
                     wemb_ref, pemb_ref, temb_ref, embg_ref, embb_ref,
                     wqkv_ref, bqkv_ref, wo_ref, bo_ref, ln1g_ref, ln1b_ref,
                     wi_ref, bi_ref, wo2_ref, bo2_ref, ln2g_ref, ln2b_ref,
                     headw_ref, headb_ref,
                     out_ref):
    """Whole BertMRCModel forward for one batch row; grid=(BATCH,) parallel."""
    S = ids_ref.shape[1]
    scale = 1.0 / math.sqrt(HEAD_DIM)

    def layer_norm(x, g, b):
        mean = jnp.mean(x, axis=-1, keepdims=True)
        cen = x - mean
        var = jnp.mean(cen * cen, axis=-1, keepdims=True)
        return cen * jax.lax.rsqrt(var + LN_EPS) * g + b

    def gelu(x):
        # TODO(synk): HF BERT default is exact erf-GELU; tanh approximation here (~1e-3 diff).
        c = math.sqrt(2.0 / math.pi)
        return 0.5 * x * (1.0 + jnp.tanh(c * (x + 0.044715 * x * x * x)))

    # ---- embeddings: one-hot gathers on the MXU (no XLA gather dispatch) ----
    ids = ids_ref[0]                                              # (S, 1) int32
    tts = tt_ref[0]                                               # (S, 1) int32
    word_oh = (jax.lax.broadcasted_iota(jnp.int32, (S, VOCAB_SIZE), 1)
               == ids).astype(jnp.float32)                        # (S, V)
    type_oh = (jax.lax.broadcasted_iota(jnp.int32, (S, TYPE_VOCAB), 1)
               == tts).astype(jnp.float32)                        # (S, 2)
    emb = (jnp.dot(word_oh, wemb_ref[...], preferred_element_type=jnp.float32)
           + pemb_ref[0:S, :]
           + jnp.dot(type_oh, temb_ref[...], preferred_element_type=jnp.float32))
    x = layer_norm(emb, embg_ref[...], embb_ref[...])             # (S, H)

    # additive key mask, broadcast over (NH, S, S)
    add_mask = (1.0 - amask_ref[...]) * -1e9                      # (1, 1, S)

    for l in range(NUM_LAYERS):
        # ---- fused QKV projection: one (S, H) @ (H, 3H) matmul ----
        qkv = (jnp.dot(x, wqkv_ref[l], preferred_element_type=jnp.float32)
               + bqkv_ref[l])                                     # (S, 3H)

        # repack once into head-major (NH, S, dh) for batched attention
        def heads(base):
            return jnp.stack(
                [qkv[:, base + h * HEAD_DIM: base + (h + 1) * HEAD_DIM]
                 for h in range(NUM_HEADS)], axis=0)              # (NH, S, dh)

        q = heads(0)
        k = heads(HIDDEN)
        v = heads(2 * HIDDEN)

        # ---- batched scaled dot-product attention (single einsums, all heads) ----
        s = jnp.einsum('nqd,nkd->nqk', q, k,
                       preferred_element_type=jnp.float32)        # (NH, S, S)
        s = s * scale + add_mask
        s = s - jnp.max(s, axis=-1, keepdims=True)
        p = jnp.exp(s)
        p = p / jnp.sum(p, axis=-1, keepdims=True)                # exact softmax
        ctx = jnp.einsum('nqk,nkd->nqd', p, v,
                         preferred_element_type=jnp.float32)      # (NH, S, dh)

        # ---- head merge + output projection fused: sum_h ctx_h @ W_O[h] ----
        attn = jnp.einsum('nsd,ndh->nsh', ctx, wo_ref[l],
                          preferred_element_type=jnp.float32)     # (NH, S, H)
        attn_out = jnp.sum(attn, axis=0) + bo_ref[l]              # (S, H)
        x = layer_norm(attn_out + x, ln1g_ref[l], ln1b_ref[l])

        # ---- feed-forward + residual + LN ----
        inter = gelu(jnp.dot(x, wi_ref[l],
                             preferred_element_type=jnp.float32) + bi_ref[l])
        ffn = jnp.dot(inter, wo2_ref[l],
                      preferred_element_type=jnp.float32) + bo2_ref[l]
        x = layer_norm(ffn + x, ln2g_ref[l], ln2b_ref[l])

    # ---- MRC head: mid_linear folded into (start|end) fc, lane-dense store ----
    logits = (jnp.dot(x, headw_ref[...], preferred_element_type=jnp.float32)
              + headb_ref[...])                                   # (S, OUT_PAD)
    out_ref[0] = logits


# ============================ parameter init =================================
def _dense_init(key, fan_in, fan_out):
    w = 0.02 * jax.random.normal(key, (fan_in, fan_out), jnp.float32)
    b = jnp.zeros((fan_out,), jnp.float32)
    return w, b


def init_params(key):
    keys = iter(jax.random.split(key, 64))
    p = {}
    p["word_emb"] = 0.02 * jax.random.normal(next(keys), (VOCAB_SIZE, HIDDEN), jnp.float32)
    p["pos_emb"] = 0.02 * jax.random.normal(next(keys), (MAX_POS, HIDDEN), jnp.float32)
    p["type_emb"] = 0.02 * jax.random.normal(next(keys), (TYPE_VOCAB, HIDDEN), jnp.float32)
    p["emb_ln_g"] = jnp.ones((1, HIDDEN), jnp.float32)
    p["emb_ln_b"] = jnp.zeros((1, HIDDEN), jnp.float32)

    wqkv, bqkv, woh, bo = [], [], [], []
    ln1g, ln1b, wi, bi, wo2, bo2, ln2g, ln2b = [], [], [], [], [], [], [], []
    for _ in range(NUM_LAYERS):
        wq, bq = _dense_init(next(keys), HIDDEN, HIDDEN)
        wk, bk = _dense_init(next(keys), HIDDEN, HIDDEN)
        wv, bv = _dense_init(next(keys), HIDDEN, HIDDEN)
        wqkv.append(jnp.concatenate([wq, wk, wv], axis=1))            # (H, 3H)
        bqkv.append(jnp.concatenate([bq, bk, bv])[None, :])           # (1, 3H)
        w, b = _dense_init(next(keys), HIDDEN, HIDDEN)
        woh.append(w.reshape(NUM_HEADS, HEAD_DIM, HIDDEN))            # (NH, dh, H) head-major
        bo.append(b[None, :])
        ln1g.append(jnp.ones((1, HIDDEN), jnp.float32))
        ln1b.append(jnp.zeros((1, HIDDEN), jnp.float32))
        w, b = _dense_init(next(keys), HIDDEN, INTERMEDIATE)
        wi.append(w); bi.append(b[None, :])
        w, b = _dense_init(next(keys), INTERMEDIATE, HIDDEN)
        wo2.append(w); bo2.append(b[None, :])
        ln2g.append(jnp.ones((1, HIDDEN), jnp.float32))
        ln2b.append(jnp.zeros((1, HIDDEN), jnp.float32))

    stack = lambda xs: jnp.stack(xs, axis=0)
    p["wqkv"], p["bqkv"] = stack(wqkv), stack(bqkv)
    p["wo_heads"], p["bo"] = stack(woh), stack(bo)
    p["ln1_g"], p["ln1_b"] = stack(ln1g), stack(ln1b)
    p["wi"], p["bi"] = stack(wi), stack(bi)
    p["wo2"], p["bo2"] = stack(wo2), stack(bo2)
    p["ln2_g"], p["ln2_b"] = stack(ln2g), stack(ln2b)

    # MRC head: mid_linear folded into fused (start_fc | end_fc); exact since the
    # reference module applies no nonlinearity between them.  Zero-pad to 128 lanes.
    mid_w, mid_b = _dense_init(next(keys), HIDDEN, HIDDEN)
    ws, bs = _dense_init(next(keys), HIDDEN, 2)
    we, be = _dense_init(next(keys), HIDDEN, 2)
    se_w = jnp.concatenate([ws, we], axis=1)                           # (H, 4)
    se_b = jnp.concatenate([bs, be])                                   # (4,)
    head_w = mid_w @ se_w                                              # (H, 4)
    head_b = mid_b @ se_w + se_b                                       # (4,)
    p["head_w"] = jnp.zeros((HIDDEN, OUT_PAD), jnp.float32).at[:, :4].set(head_w)
    p["head_b"] = jnp.zeros((1, OUT_PAD), jnp.float32).at[0, :4].set(head_b)

    # unfolded copies only for the pure-JAX reference check (unused by the kernel)
    p["_ref_mid_w"], p["_ref_mid_b"] = mid_w, mid_b
    p["_ref_start_w"], p["_ref_start_b"] = ws, bs
    p["_ref_end_w"], p["_ref_end_b"] = we, be
    return p


# ============================== forward pass =================================
def _rep_spec(shape):
    n = len(shape)
    return pl.BlockSpec(tuple(shape), lambda b, _n=n: (0,) * _n)


def bert_mrc_forward(params, input_ids, attention_mask, token_type_ids):
    B, S = input_ids.shape
    ids3 = input_ids.astype(jnp.int32).reshape(B, S, 1)
    tt3 = token_type_ids.astype(jnp.int32).reshape(B, S, 1)
    am3 = attention_mask.astype(jnp.float32).reshape(B, 1, S)

    in_specs = [
        pl.BlockSpec((1, S, 1), lambda b: (b, 0, 0)),        # input ids
        pl.BlockSpec((1, S, 1), lambda b: (b, 0, 0)),        # token type ids
        pl.BlockSpec((1, 1, S), lambda b: (b, 0, 0)),        # attention mask
        _rep_spec(params["word_emb"].shape),
        _rep_spec(params["pos_emb"].shape),
        _rep_spec(params["type_emb"].shape),
        _rep_spec(params["emb_ln_g"].shape),
        _rep_spec(params["emb_ln_b"].shape),
        _rep_spec(params["wqkv"].shape),
        _rep_spec(params["bqkv"].shape),
        _rep_spec(params["wo_heads"].shape),
        _rep_spec(params["bo"].shape),
        _rep_spec(params["ln1_g"].shape),
        _rep_spec(params["ln1_b"].shape),
        _rep_spec(params["wi"].shape),
        _rep_spec(params["bi"].shape),
        _rep_spec(params["wo2"].shape),
        _rep_spec(params["bo2"].shape),
        _rep_spec(params["ln2_g"].shape),
        _rep_spec(params["ln2_b"].shape),
        _rep_spec(params["head_w"].shape),
        _rep_spec(params["head_b"].shape),
    ]

    out = pl.pallas_call(
        _bert_mrc_kernel,
        out_shape=jax.ShapeDtypeStruct((B, S, OUT_PAD), jnp.float32),
        grid_spec=pltpu.PrefetchScalarGridSpec(
            num_scalar_prefetch=0,
            grid=(B,),
            in_specs=in_specs,
            out_specs=pl.BlockSpec((1, S, OUT_PAD), lambda b: (b, 0, 0)),
        ),
        compiler_params=pltpu.CompilerParams(
            dimension_semantics=("parallel",)),
    )(ids3, tt3, am3,
      params["word_emb"], params["pos_emb"], params["type_emb"],
      params["emb_ln_g"], params["emb_ln_b"],
      params["wqkv"], params["bqkv"], params["wo_heads"], params["bo"],
      params["ln1_g"], params["ln1_b"],
      params["wi"], params["bi"], params["wo2"], params["bo2"],
      params["ln2_g"], params["ln2_b"],
      params["head_w"], params["head_b"])

    logits = out[:, :, :4]
    return logits[..., 0:2], logits[..., 2:4]


# ======================= pure-JAX reference (sanity) =========================
def _ln_ref(x, g, b):
    mean = jnp.mean(x, -1, keepdims=True)
    var = jnp.mean((x - mean) ** 2, -1, keepdims=True)
    return (x - mean) * jax.lax.rsqrt(var + LN_EPS) * g + b


def _gelu_ref(x):
    c = math.sqrt(2.0 / math.pi)
    return 0.5 * x * (1.0 + jnp.tanh(c * (x + 0.044715 * x ** 3)))


def reference_forward(params, input_ids, attention_mask, token_type_ids):
    B, S = input_ids.shape
    emb = (params["word_emb"][input_ids]
           + params["pos_emb"][:S][None]
           + params["type_emb"][token_type_ids])
    x = _ln_ref(emb, params["emb_ln_g"][0], params["emb_ln_b"][0])
    mask = (1.0 - attention_mask.astype(jnp.float32))[:, None, None, :] * -1e9
    scale = 1.0 / math.sqrt(HEAD_DIM)
    for l in range(NUM_LAYERS):
        qkv = x @ params["wqkv"][l] + params["bqkv"][l][0]
        q, k, v = jnp.split(qkv, 3, axis=-1)
        split = lambda t: t.reshape(B, S, NUM_HEADS, HEAD_DIM).transpose(0, 2, 1, 3)
        q, k, v = split(q), split(k), split(v)
        s = jnp.einsum('bnqd,bnkd->bnqk', q, k) * scale + mask
        p = jax.nn.softmax(s, axis=-1)
        ctx = jnp.einsum('bnqk,bnkd->bnqd', p, v)
        ctx = ctx.transpose(0, 2, 1, 3).reshape(B, S, HIDDEN)
        wo_dense = params["wo_heads"][l].reshape(HIDDEN, HIDDEN)
        attn = ctx @ wo_dense + params["bo"][l][0]
        x = _ln_ref(attn + x, params["ln1_g"][l][0], params["ln1_b"][l][0])
        inter = _gelu_ref(x @ params["wi"][l] + params["bi"][l][0])
        ffn = inter @ params["wo2"][l] + params["bo2"][l][0]
        x = _ln_ref(ffn + x, params["ln2_g"][l][0], params["ln2_b"][l][0])
    seq = x @ params["_ref_mid_w"] + params["_ref_mid_b"]
    start = seq @ params["_ref_start_w"] + params["_ref_start_b"]
    end = seq @ params["_ref_end_w"] + params["_ref_end_b"]
    return start, end


# ================================== main =====================================
if __name__ == "__main__":
    root = jax.random.PRNGKey(0)
    k_param, k_ids, k_type = jax.random.split(root, 3)

    params = init_params(k_param)

    input_ids = jax.random.randint(k_ids, (BATCH, SEQ), 0, VOCAB_SIZE, dtype=jnp.int32)
    token_type_ids = jax.random.randint(k_type, (BATCH, SEQ), 0, TYPE_VOCAB, dtype=jnp.int32)
    # mask out the last two tokens of the second sequence (padding)
    attention_mask = jnp.ones((BATCH, SEQ), jnp.int32).at[1, SEQ - 2:].set(0)

    fwd = jax.jit(bert_mrc_forward)
    start_logits, end_logits = fwd(params, input_ids, attention_mask, token_type_ids)
    jax.block_until_ready((start_logits, end_logits))

    assert start_logits.shape == (BATCH, SEQ, 2)
    assert end_logits.shape == (BATCH, SEQ, 2)
    assert bool(jnp.all(jnp.isfinite(start_logits)))
    assert bool(jnp.all(jnp.isfinite(end_logits)))

    # sanity check against a pure-JAX reference (unfolded MRC head, same math)
    ref_start, ref_end = reference_forward(params, input_ids, attention_mask, token_type_ids)
    assert bool(jnp.allclose(start_logits, ref_start, atol=5e-4, rtol=5e-2))
    assert bool(jnp.allclose(end_logits, ref_end, atol=5e-4, rtol=5e-2))

    print("KERNEL_OK")
</pallas_src>

<mosaic_0001>
module attributes {stable_mosaic.version = 11 : i64} {
  func.func @_bert_mrc_kernel(%arg0: i32, %arg1: memref<1x8x1xi32, #tpu.memory_space<vmem>>, %arg2: memref<1x8x1xi32, #tpu.memory_space<vmem>>, %arg3: memref<1x1x8xf32, #tpu.memory_space<vmem>>, %arg4: memref<100x32xf32, #tpu.memory_space<vmem>>, %arg5: memref<64x32xf32, #tpu.memory_space<vmem>>, %arg6: memref<2x32xf32, #tpu.memory_space<vmem>>, %arg7: memref<1x32xf32, #tpu.memory_space<vmem>>, %arg8: memref<1x32xf32, #tpu.memory_space<vmem>>, %arg9: memref<2x32x96xf32, #tpu.memory_space<vmem>>, %arg10: memref<2x1x96xf32, #tpu.memory_space<vmem>>, %arg11: memref<2x4x8x32xf32, #tpu.memory_space<vmem>>, %arg12: memref<2x1x32xf32, #tpu.memory_space<vmem>>, %arg13: memref<2x1x32xf32, #tpu.memory_space<vmem>>, %arg14: memref<2x1x32xf32, #tpu.memory_space<vmem>>, %arg15: memref<2x32x64xf32, #tpu.memory_space<vmem>>, %arg16: memref<2x1x64xf32, #tpu.memory_space<vmem>>, %arg17: memref<2x64x32xf32, #tpu.memory_space<vmem>>, %arg18: memref<2x1x32xf32, #tpu.memory_space<vmem>>, %arg19: memref<2x1x32xf32, #tpu.memory_space<vmem>>, %arg20: memref<2x1x32xf32, #tpu.memory_space<vmem>>, %arg21: memref<32x128xf32, #tpu.memory_space<vmem>>, %arg22: memref<1x128xf32, #tpu.memory_space<vmem>>, %arg23: memref<1x8x128xf32, #tpu.memory_space<vmem>>) attributes {dimension_semantics = [#tpu.dimension_semantics<parallel>], iteration_bounds = array<i64: 2>, scalar_prefetch = 0 : i64, scratch_operands = 0 : i64, tpu.core_type = #tpu.core_type<tc>, window_params = [{transform_indices = @transform_0, window_bounds = array<i64: 1, 8, 1>}, {transform_indices = @transform_1, window_bounds = array<i64: 1, 8, 1>}, {transform_indices = @transform_2, window_bounds = array<i64: 1, 1, 8>}, {pipeline_mode = #tpu.pipeline_mode<synchronous>, transform_indices = @transform_3, window_bounds = array<i64: 100, 32>}, {pipeline_mode = #tpu.pipeline_mode<synchronous>, transform_indices = @transform_4, window_bounds = array<i64: 64, 32>}, {pipeline_mode = #tpu.pipeline_mode<synchronous>, transform_indices = @transform_5, window_bounds = array<i64: 2, 32>}, {pipeline_mode = #tpu.pipeline_mode<synchronous>, transform_indices = @transform_6, window_bounds = array<i64: 1, 32>}, {pipeline_mode = #tpu.pipeline_mode<synchronous>, transform_indices = @transform_7, window_bounds = array<i64: 1, 32>}, {pipeline_mode = #tpu.pipeline_mode<synchronous>, transform_indices = @transform_8, window_bounds = array<i64: 2, 32, 96>}, {pipeline_mode = #tpu.pipeline_mode<synchronous>, transform_indices = @transform_9, window_bounds = array<i64: 2, 1, 96>}, {pipeline_mode = #tpu.pipeline_mode<synchronous>, transform_indices = @transform_10, window_bounds = array<i64: 2, 4, 8, 32>}, {pipeline_mode = #tpu.pipeline_mode<synchronous>, transform_indices = @transform_11, window_bounds = array<i64: 2, 1, 32>}, {pipeline_mode = #tpu.pipeline_mode<synchronous>, transform_indices = @transform_12, window_bounds = array<i64: 2, 1, 32>}, {pipeline_mode = #tpu.pipeline_mode<synchronous>, transform_indices = @transform_13, window_bounds = array<i64: 2, 1, 32>}, {pipeline_mode = #tpu.pipeline_mode<synchronous>, transform_indices = @transform_14, window_bounds = array<i64: 2, 32, 64>}, {pipeline_mode = #tpu.pipeline_mode<synchronous>, transform_indices = @transform_15, window_bounds = array<i64: 2, 1, 64>}, {pipeline_mode = #tpu.pipeline_mode<synchronous>, transform_indices = @transform_16, window_bounds = array<i64: 2, 64, 32>}, {pipeline_mode = #tpu.pipeline_mode<synchronous>, transform_indices = @transform_17, window_bounds = array<i64: 2, 1, 32>}, {pipeline_mode = #tpu.pipeline_mode<synchronous>, transform_indices = @transform_18, window_bounds = array<i64: 2, 1, 32>}, {pipeline_mode = #tpu.pipeline_mode<synchronous>, transform_indices = @transform_19, window_bounds = array<i64: 2, 1, 32>}, {pipeline_mode = #tpu.pipeline_mode<synchronous>, transform_indices = @transform_20, window_bounds = array<i64: 32, 128>}, {pipeline_mode = #tpu.pipeline_mode<synchronous>, transform_indices = @transform_21, window_bounds = array<i64: 1, 128>}, {transform_indices = @transform_22, window_bounds = array<i64: 1, 8, 128>}]} {
    %c0 = arith.constant 0 : index
    %c0_0 = arith.constant 0 : index
    %c0_1 = arith.constant 0 : index
    %0 = vector.load %arg1[%c0, %c0_0, %c0_1] : memref<1x8x1xi32, #tpu.memory_space<vmem>>, vector<1x8x1xi32>
    %1 = vector.shape_cast %0 : vector<1x8x1xi32> to vector<8x1xi32>
    %c0_2 = arith.constant 0 : index
    %c0_3 = arith.constant 0 : index
    %c0_4 = arith.constant 0 : index
    %2 = vector.load %arg2[%c0_2, %c0_3, %c0_4] : memref<1x8x1xi32, #tpu.memory_space<vmem>>, vector<1x8x1xi32>
    %3 = vector.shape_cast %2 : vector<1x8x1xi32> to vector<8x1xi32>
    %4 = tpu.iota {dimensions = array<i32: 1>} : vector<8x100xi32>
    %5 = vector.broadcast %1 : vector<8x1xi32> to vector<8x100xi32>
    %6 = arith.cmpi eq, %4, %5 : vector<8x100xi32>
    %7 = arith.extui %6 : vector<8x100xi1> to vector<8x100xi32>
    %8 = arith.sitofp %7 : vector<8x100xi32> to vector<8x100xf32>
    %9 = tpu.iota {dimensions = array<i32: 1>} : vector<8x2xi32>
    %10 = vector.broadcast %3 : vector<8x1xi32> to vector<8x2xi32>
    %11 = arith.cmpi eq, %9, %10 : vector<8x2xi32>
    %12 = arith.extui %11 : vector<8x2xi1> to vector<8x2xi32>
    %13 = arith.sitofp %12 : vector<8x2xi32> to vector<8x2xf32>
    %c0_5 = arith.constant 0 : index
    %c0_6 = arith.constant 0 : index
    %14 = vector.load %arg4[%c0_5, %c0_6] : memref<100x32xf32, #tpu.memory_space<vmem>>, vector<100x32xf32>
    %cst = arith.constant dense<0.000000e+00> : vector<8x32xf32>
    %15 = tpu.matmul %8, %14, %cst {dimension_numbers = #tpu.dot_dimension_numbers<[1], [0], [0], [1], [0, 0, 1, 1], [], []>} : vector<8x100xf32>, vector<100x32xf32>, vector<8x32xf32> -> vector<8x32xf32>
    %c0_7 = arith.constant 0 : index
    %c0_8 = arith.constant 0 : index
    %16 = vector.load %arg5[%c0_7, %c0_8] : memref<64x32xf32, #tpu.memory_space<vmem>>, vector<8x32xf32>
    %17 = arith.addf %15, %16 : vector<8x32xf32>
    %c0_9 = arith.constant 0 : index
    %c0_10 = arith.constant 0 : index
    %18 = vector.load %arg6[%c0_9, %c0_10] : memref<2x32xf32, #tpu.memory_space<vmem>>, vector<2x32xf32>
    %cst_11 = arith.constant dense<0.000000e+00> : vector<8x32xf32>
    %19 = tpu.matmul %13, %18, %cst_11 {dimension_numbers = #tpu.dot_dimension_numbers<[1], [0], [0], [1], [0, 0, 1, 1], [], []>} : vector<8x2xf32>, vector<2x32xf32>, vector<8x32xf32> -> vector<8x32xf32>
    %20 = arith.addf %17, %19 : vector<8x32xf32>
    %c0_12 = arith.constant 0 : index
    %c0_13 = arith.constant 0 : index
    %21 = vector.load %arg7[%c0_12, %c0_13] : memref<1x32xf32, #tpu.memory_space<vmem>>, vector<1x32xf32>
    %c0_14 = arith.constant 0 : index
    %c0_15 = arith.constant 0 : index
    %22 = vector.load %arg8[%c0_14, %c0_15] : memref<1x32xf32, #tpu.memory_space<vmem>>, vector<1x32xf32>
    %cst_16 = arith.constant dense<0.000000e+00> : vector<8xf32>
    %23 = vector.multi_reduction <add>, %20, %cst_16 [1] : vector<8x32xf32> to vector<8xf32>
    %24 = vector.shape_cast %23 : vector<8xf32> to vector<8x1xf32>
    %cst_17 = arith.constant 3.200000e+01 : f32
    %25 = vector.broadcast %cst_17 : f32 to vector<8x1xf32>
    %26 = arith.divf %24, %25 : vector<8x1xf32>
    %27 = vector.broadcast %26 : vector<8x1xf32> to vector<8x32xf32>
    %28 = arith.subf %20, %27 : vector<8x32xf32>
    %29 = arith.mulf %28, %28 : vector<8x32xf32>
    %cst_18 = arith.constant dense<0.000000e+00> : vector<8xf32>
    %30 = vector.multi_reduction <add>, %29, %cst_18 [1] : vector<8x32xf32> to vector<8xf32>
    %31 = vector.shape_cast %30 : vector<8xf32> to vector<8x1xf32>
    %cst_19 = arith.constant 3.200000e+01 : f32
    %32 = vector.broadcast %cst_19 : f32 to vector<8x1xf32>
    %33 = arith.divf %31, %32 : vector<8x1xf32>
    %cst_20 = arith.constant 9.99999996E-13 : f32
    %34 = vector.broadcast %cst_20 : f32 to vector<8x1xf32>
    %35 = arith.addf %33, %34 : vector<8x1xf32>
    %36 = math.rsqrt %35 : vector<8x1xf32>
    %37 = vector.broadcast %36 : vector<8x1xf32> to vector<8x32xf32>
    %38 = arith.mulf %28, %37 : vector<8x32xf32>
    %39 = vector.broadcast %21 : vector<1x32xf32> to vector<8x32xf32>
    %40 = arith.mulf %38, %39 : vector<8x32xf32>
    %41 = vector.broadcast %22 : vector<1x32xf32> to vector<8x32xf32>
    %42 = arith.addf %40, %41 : vector<8x32xf32>
    %c0_21 = arith.constant 0 : index
    %c0_22 = arith.constant 0 : index
    %c0_23 = arith.constant 0 : index
    %43 = vector.load %arg3[%c0_21, %c0_22, %c0_23] : memref<1x1x8xf32, #tpu.memory_space<vmem>>, vector<1x1x8xf32>
    %cst_24 = arith.constant 1.000000e+00 : f32
    %44 = vector.broadcast %cst_24 : f32 to vector<1x1x8xf32>
    %45 = arith.subf %44, %43 : vector<1x1x8xf32>
    %cst_25 = arith.constant -1.000000e+09 : f32
    %46 = vector.broadcast %cst_25 : f32 to vector<1x1x8xf32>
    %47 = arith.mulf %45, %46 : vector<1x1x8xf32>
    %c0_26 = arith.constant 0 : index
    %c0_27 = arith.constant 0 : index
    %c0_28 = arith.constant 0 : index
    %48 = vector.load %arg9[%c0_26, %c0_27, %c0_28] : memref<2x32x96xf32, #tpu.memory_space<vmem>>, vector<1x32x96xf32>
    %49 = vector.shape_cast %48 : vector<1x32x96xf32> to vector<32x96xf32>
    %cst_29 = arith.constant dense<0.000000e+00> : vector<8x96xf32>
    %50 = tpu.matmul %42, %49, %cst_29 {dimension_numbers = #tpu.dot_dimension_numbers<[1], [0], [0], [1], [0, 0, 1, 1], [], []>} : vector<8x32xf32>, vector<32x96xf32>, vector<8x96xf32> -> vector<8x96xf32>
    %c0_30 = arith.constant 0 : index
    %c0_31 = arith.constant 0 : index
    %c0_32 = arith.constant 0 : index
    %51 = vector.load %arg10[%c0_30, %c0_31, %c0_32] : memref<2x1x96xf32, #tpu.memory_space<vmem>>, vector<1x1x96xf32>
    %52 = vector.shape_cast %51 : vector<1x1x96xf32> to vector<1x96xf32>
    %53 = vector.broadcast %52 : vector<1x96xf32> to vector<8x96xf32>
    %54 = arith.addf %50, %53 : vector<8x96xf32>
    %55 = vector.extract_strided_slice %54 {offsets = [0, 0], sizes = [8, 8], strides = [1, 1]} : vector<8x96xf32> to vector<8x8xf32>
    %56 = vector.extract_strided_slice %54 {offsets = [0, 8], sizes = [8, 8], strides = [1, 1]} : vector<8x96xf32> to vector<8x8xf32>
    %57 = vector.extract_strided_slice %54 {offsets = [0, 16], sizes = [8, 8], strides = [1, 1]} : vector<8x96xf32> to vector<8x8xf32>
    %58 = vector.extract_strided_slice %54 {offsets = [0, 24], sizes = [8, 8], strides = [1, 1]} : vector<8x96xf32> to vector<8x8xf32>
    %59 = vector.shape_cast %55 : vector<8x8xf32> to vector<1x8x8xf32>
    %60 = vector.shape_cast %56 : vector<8x8xf32> to vector<1x8x8xf32>
    %61 = vector.shape_cast %57 : vector<8x8xf32> to vector<1x8x8xf32>
    %62 = vector.shape_cast %58 : vector<8x8xf32> to vector<1x8x8xf32>
    %63 = tpu.concatenate %59, %60, %61, %62 in 0 : vector<1x8x8xf32>, vector<1x8x8xf32>, vector<1x8x8xf32>, vector<1x8x8xf32> -> vector<4x8x8xf32>
    %64 = vector.extract_strided_slice %54 {offsets = [0, 32], sizes = [8, 8], strides = [1, 1]} : vector<8x96xf32> to vector<8x8xf32>
    %65 = vector.extract_strided_slice %54 {offsets = [0, 40], sizes = [8, 8], strides = [1, 1]} : vector<8x96xf32> to vector<8x8xf32>
    %66 = vector.extract_strided_slice %54 {offsets = [0, 48], sizes = [8, 8], strides = [1, 1]} : vector<8x96xf32> to vector<8x8xf32>
    %67 = vector.extract_strided_slice %54 {offsets = [0, 56], sizes = [8, 8], strides = [1, 1]} : vector<8x96xf32> to vector<8x8xf32>
    %68 = vector.shape_cast %64 : vector<8x8xf32> to vector<1x8x8xf32>
    %69 = vector.shape_cast %65 : vector<8x8xf32> to vector<1x8x8xf32>
    %70 = vector.shape_cast %66 : vector<8x8xf32> to vector<1x8x8xf32>
    %71 = vector.shape_cast %67 : vector<8x8xf32> to vector<1x8x8xf32>
    %72 = tpu.concatenate %68, %69, %70, %71 in 0 : vector<1x8x8xf32>, vector<1x8x8xf32>, vector<1x8x8xf32>, vector<1x8x8xf32> -> vector<4x8x8xf32>
    %73 = vector.extract_strided_slice %54 {offsets = [0, 64], sizes = [8, 8], strides = [1, 1]} : vector<8x96xf32> to vector<8x8xf32>
    %74 = vector.extract_strided_slice %54 {offsets = [0, 72], sizes = [8, 8], strides = [1, 1]} : vector<8x96xf32> to vector<8x8xf32>
    %75 = vector.extract_strided_slice %54 {offsets = [0, 80], sizes = [8, 8], strides = [1, 1]} : vector<8x96xf32> to vector<8x8xf32>
    %76 = vector.extract_strided_slice %54 {offsets = [0, 88], sizes = [8, 8], strides = [1, 1]} : vector<8x96xf32> to vector<8x8xf32>
    %77 = vector.shape_cast %73 : vector<8x8xf32> to vector<1x8x8xf32>
    %78 = vector.shape_cast %74 : vector<8x8xf32> to vector<1x8x8xf32>
    %79 = vector.shape_cast %75 : vector<8x8xf32> to vector<1x8x8xf32>
    %80 = vector.shape_cast %76 : vector<8x8xf32> to vector<1x8x8xf32>
    %81 = tpu.concatenate %77, %78, %79, %80 in 0 : vector<1x8x8xf32>, vector<1x8x8xf32>, vector<1x8x8xf32>, vector<1x8x8xf32> -> vector<4x8x8xf32>
    "tpu.trace_start"() <{level = 10 : i32, message = "nqd,nkd->nqk"}> : () -> ()
    %cst_33 = arith.constant dense<0.000000e+00> : vector<4x8x8xf32>
    %82 = tpu.matmul %63, %72, %cst_33 {dimension_numbers = #tpu.dot_dimension_numbers<[2], [2], [1], [1], [0, 0, 0, 1, 1, 1], [0], [0]>} : vector<4x8x8xf32>, vector<4x8x8xf32>, vector<4x8x8xf32> -> vector<4x8x8xf32>
    "tpu.trace_stop"() : () -> ()
    %cst_34 = arith.constant 0.353553385 : f32
    %83 = vector.broadcast %cst_34 : f32 to vector<4x8x8xf32>
    %84 = arith.mulf %82, %83 : vector<4x8x8xf32>
    %85 = vector.broadcast %47 : vector<1x1x8xf32> to vector<4x8x8xf32>
    %86 = arith.addf %84, %85 : vector<4x8x8xf32>
    %cst_35 = arith.constant dense<0xFF800000> : vector<4x8xf32>
    %87 = vector.multi_reduction <maximumf>, %86, %cst_35 [2] : vector<4x8x8xf32> to vector<4x8xf32>
    %88 = vector.shape_cast %87 : vector<4x8xf32> to vector<4x8x1xf32>
    %89 = vector.broadcast %88 : vector<4x8x1xf32> to vector<4x8x8xf32>
    %90 = arith.subf %86, %89 : vector<4x8x8xf32>
    %91 = math.exp %90 : vector<4x8x8xf32>
    %cst_36 = arith.constant dense<0.000000e+00> : vector<4x8xf32>
    %92 = vector.multi_reduction <add>, %91, %cst_36 [2] : vector<4x8x8xf32> to vector<4x8xf32>
    %93 = vector.shape_cast %92 : vector<4x8xf32> to vector<4x8x1xf32>
    %94 = vector.broadcast %93 : vector<4x8x1xf32> to vector<4x8x8xf32>
    %95 = arith.divf %91, %94 : vector<4x8x8xf32>
    "tpu.trace_start"() <{level = 10 : i32, message = "nqk,nkd->nqd"}> : () -> ()
    %cst_37 = arith.constant dense<0.000000e+00> : vector<4x8x8xf32>
    %96 = tpu.matmul %95, %81, %cst_37 {dimension_numbers = #tpu.dot_dimension_numbers<[2], [1], [1], [2], [0, 0, 0, 1, 1, 2], [0], [0]>} : vector<4x8x8xf32>, vector<4x8x8xf32>, vector<4x8x8xf32> -> vector<4x8x8xf32>
    "tpu.trace_stop"() : () -> ()
    %c0_38 = arith.constant 0 : index
    %c0_39 = arith.constant 0 : index
    %c0_40 = arith.constant 0 : index
    %c0_41 = arith.constant 0 : index
    %97 = vector.load %arg11[%c0_38, %c0_39, %c0_40, %c0_41] : memref<2x4x8x32xf32, #tpu.memory_space<vmem>>, vector<1x4x8x32xf32>
    %98 = vector.shape_cast %97 : vector<1x4x8x32xf32> to vector<4x8x32xf32>
    "tpu.trace_start"() <{level = 10 : i32, message = "nsd,ndh->nsh"}> : () -> ()
    %cst_42 = arith.constant dense<0.000000e+00> : vector<4x8x32xf32>
    %99 = tpu.matmul %96, %98, %cst_42 {dimension_numbers = #tpu.dot_dimension_numbers<[2], [1], [1], [2], [0, 0, 0, 1, 1, 2], [0], [0]>} : vector<4x8x8xf32>, vector<4x8x32xf32>, vector<4x8x32xf32> -> vector<4x8x32xf32>
    "tpu.trace_stop"() : () -> ()
    %cst_43 = arith.constant dense<0.000000e+00> : vector<8x32xf32>
    %100 = vector.multi_reduction <add>, %99, %cst_43 [0] : vector<4x8x32xf32> to vector<8x32xf32>
    %c0_44 = arith.constant 0 : index
    %c0_45 = arith.constant 0 : index
    %c0_46 = arith.constant 0 : index
    %101 = vector.load %arg12[%c0_44, %c0_45, %c0_46] : memref<2x1x32xf32, #tpu.memory_space<vmem>>, vector<1x1x32xf32>
    %102 = vector.shape_cast %101 : vector<1x1x32xf32> to vector<1x32xf32>
    %103 = vector.broadcast %102 : vector<1x32xf32> to vector<8x32xf32>
    %104 = arith.addf %100, %103 : vector<8x32xf32>
    %105 = arith.addf %104, %42 : vector<8x32xf32>
    %c0_47 = arith.constant 0 : index
    %c0_48 = arith.constant 0 : index
    %c0_49 = arith.constant 0 : index
    %106 = vector.load %arg13[%c0_47, %c0_48, %c0_49] : memref<2x1x32xf32, #tpu.memory_space<vmem>>, vector<1x1x32xf32>
    %107 = vector.shape_cast %106 : vector<1x1x32xf32> to vector<1x32xf32>
    %c0_50 = arith.constant 0 : index
    %c0_51 = arith.constant 0 : index
    %c0_52 = arith.constant 0 : index
    %108 = vector.load %arg14[%c0_50, %c0_51, %c0_52] : memref<2x1x32xf32, #tpu.memory_space<vmem>>, vector<1x1x32xf32>
    %109 = vector.shape_cast %108 : vector<1x1x32xf32> to vector<1x32xf32>
    %cst_53 = arith.constant dense<0.000000e+00> : vector<8xf32>
    %110 = vector.multi_reduction <add>, %105, %cst_53 [1] : vector<8x32xf32> to vector<8xf32>
    %111 = vector.shape_cast %110 : vector<8xf32> to vector<8x1xf32>
    %cst_54 = arith.constant 3.200000e+01 : f32
    %112 = vector.broadcast %cst_54 : f32 to vector<8x1xf32>
    %113 = arith.divf %111, %112 : vector<8x1xf32>
    %114 = vector.broadcast %113 : vector<8x1xf32> to vector<8x32xf32>
    %115 = arith.subf %105, %114 : vector<8x32xf32>
    %116 = arith.mulf %115, %115 : vector<8x32xf32>
    %cst_55 = arith.constant dense<0.000000e+00> : vector<8xf32>
    %117 = vector.multi_reduction <add>, %116, %cst_55 [1] : vector<8x32xf32> to vector<8xf32>
    %118 = vector.shape_cast %117 : vector<8xf32> to vector<8x1xf32>
    %cst_56 = arith.constant 3.200000e+01 : f32
    %119 = vector.broadcast %cst_56 : f32 to vector<8x1xf32>
    %120 = arith.divf %118, %119 : vector<8x1xf32>
    %cst_57 = arith.constant 9.99999996E-13 : f32
    %121 = vector.broadcast %cst_57 : f32 to vector<8x1xf32>
    %122 = arith.addf %120, %121 : vector<8x1xf32>
    %123 = math.rsqrt %122 : vector<8x1xf32>
    %124 = vector.broadcast %123 : vector<8x1xf32> to vector<8x32xf32>
    %125 = arith.mulf %115, %124 : vector<8x32xf32>
    %126 = vector.broadcast %107 : vector<1x32xf32> to vector<8x32xf32>
    %127 = arith.mulf %125, %126 : vector<8x32xf32>
    %128 = vector.broadcast %109 : vector<1x32xf32> to vector<8x32xf32>
    %129 = arith.addf %127, %128 : vector<8x32xf32>
    %c0_58 = arith.constant 0 : index
    %c0_59 = arith.constant 0 : index
    %c0_60 = arith.constant 0 : index
    %130 = vector.load %arg15[%c0_58, %c0_59, %c0_60] : memref<2x32x64xf32, #tpu.memory_space<vmem>>, vector<1x32x64xf32>
    %131 = vector.shape_cast %130 : vector<1x32x64xf32> to vector<32x64xf32>
    %cst_61 = arith.constant dense<0.000000e+00> : vector<8x64xf32>
    %132 = tpu.matmul %129, %131, %cst_61 {dimension_numbers = #tpu.dot_dimension_numbers<[1], [0], [0], [1], [0, 0, 1, 1], [], []>} : vector<8x32xf32>, vector<32x64xf32>, vector<8x64xf32> -> vector<8x64xf32>
    %c0_62 = arith.constant 0 : index
    %c0_63 = arith.constant 0 : index
    %c0_64 = arith.constant 0 : index
    %133 = vector.load %arg16[%c0_62, %c0_63, %c0_64] : memref<2x1x64xf32, #tpu.memory_space<vmem>>, vector<1x1x64xf32>
    %134 = vector.shape_cast %133 : vector<1x1x64xf32> to vector<1x64xf32>
    %135 = vector.broadcast %134 : vector<1x64xf32> to vector<8x64xf32>
    %136 = arith.addf %132, %135 : vector<8x64xf32>
    %cst_65 = arith.constant 5.000000e-01 : f32
    %137 = vector.broadcast %cst_65 : f32 to vector<8x64xf32>
    %138 = arith.mulf %137, %136 : vector<8x64xf32>
    %cst_66 = arith.constant 4.471500e-02 : f32
    %139 = vector.broadcast %cst_66 : f32 to vector<8x64xf32>
    %140 = arith.mulf %139, %136 : vector<8x64xf32>
    %141 = arith.mulf %140, %136 : vector<8x64xf32>
    %142 = arith.mulf %141, %136 : vector<8x64xf32>
    %143 = arith.addf %136, %142 : vector<8x64xf32>
    %cst_67 = arith.constant 0.797884583 : f32
    %144 = vector.broadcast %cst_67 : f32 to vector<8x64xf32>
    %145 = arith.mulf %144, %143 : vector<8x64xf32>
    %146 = math.tanh %145 : vector<8x64xf32>
    %cst_68 = arith.constant 1.000000e+00 : f32
    %147 = vector.broadcast %cst_68 : f32 to vector<8x64xf32>
    %148 = arith.addf %147, %146 : vector<8x64xf32>
    %149 = arith.mulf %138, %148 : vector<8x64xf32>
    %c0_69 = arith.constant 0 : index
    %c0_70 = arith.constant 0 : index
    %c0_71 = arith.constant 0 : index
    %150 = vector.load %arg17[%c0_69, %c0_70, %c0_71] : memref<2x64x32xf32, #tpu.memory_space<vmem>>, vector<1x64x32xf32>
    %151 = vector.shape_cast %150 : vector<1x64x32xf32> to vector<64x32xf32>
    %cst_72 = arith.constant dense<0.000000e+00> : vector<8x32xf32>
    %152 = tpu.matmul %149, %151, %cst_72 {dimension_numbers = #tpu.dot_dimension_numbers<[1], [0], [0], [1], [0, 0, 1, 1], [], []>} : vector<8x64xf32>, vector<64x32xf32>, vector<8x32xf32> -> vector<8x32xf32>
    %c0_73 = arith.constant 0 : index
    %c0_74 = arith.constant 0 : index
    %c0_75 = arith.constant 0 : index
    %153 = vector.load %arg18[%c0_73, %c0_74, %c0_75] : memref<2x1x32xf32, #tpu.memory_space<vmem>>, vector<1x1x32xf32>
    %154 = vector.shape_cast %153 : vector<1x1x32xf32> to vector<1x32xf32>
    %155 = vector.broadcast %154 : vector<1x32xf32> to vector<8x32xf32>
    %156 = arith.addf %152, %155 : vector<8x32xf32>
    %157 = arith.addf %156, %129 : vector<8x32xf32>
    %c0_76 = arith.constant 0 : index
    %c0_77 = arith.constant 0 : index
    %c0_78 = arith.constant 0 : index
    %158 = vector.load %arg19[%c0_76, %c0_77, %c0_78] : memref<2x1x32xf32, #tpu.memory_space<vmem>>, vector<1x1x32xf32>
    %159 = vector.shape_cast %158 : vector<1x1x32xf32> to vector<1x32xf32>
    %c0_79 = arith.constant 0 : index
    %c0_80 = arith.constant 0 : index
    %c0_81 = arith.constant 0 : index
    %160 = vector.load %arg20[%c0_79, %c0_80, %c0_81] : memref<2x1x32xf32, #tpu.memory_space<vmem>>, vector<1x1x32xf32>
    %161 = vector.shape_cast %160 : vector<1x1x32xf32> to vector<1x32xf32>
    %cst_82 = arith.constant dense<0.000000e+00> : vector<8xf32>
    %162 = vector.multi_reduction <add>, %157, %cst_82 [1] : vector<8x32xf32> to vector<8xf32>
    %163 = vector.shape_cast %162 : vector<8xf32> to vector<8x1xf32>
    %cst_83 = arith.constant 3.200000e+01 : f32
    %164 = vector.broadcast %cst_83 : f32 to vector<8x1xf32>
    %165 = arith.divf %163, %164 : vector<8x1xf32>
    %166 = vector.broadcast %165 : vector<8x1xf32> to vector<8x32xf32>
    %167 = arith.subf %157, %166 : vector<8x32xf32>
    %168 = arith.mulf %167, %167 : vector<8x32xf32>
    %cst_84 = arith.constant dense<0.000000e+00> : vector<8xf32>
    %169 = vector.multi_reduction <add>, %168, %cst_84 [1] : vector<8x32xf32> to vector<8xf32>
    %170 = vector.shape_cast %169 : vector<8xf32> to vector<8x1xf32>
    %cst_85 = arith.constant 3.200000e+01 : f32
    %171 = vector.broadcast %cst_85 : f32 to vector<8x1xf32>
    %172 = arith.divf %170, %171 : vector<8x1xf32>
    %cst_86 = arith.constant 9.99999996E-13 : f32
    %173 = vector.broadcast %cst_86 : f32 to vector<8x1xf32>
    %174 = arith.addf %172, %173 : vector<8x1xf32>
    %175 = math.rsqrt %174 : vector<8x1xf32>
    %176 = vector.broadcast %175 : vector<8x1xf32> to vector<8x32xf32>
    %177 = arith.mulf %167, %176 : vector<8x32xf32>
    %178 = vector.broadcast %159 : vector<1x32xf32> to vector<8x32xf32>
    %179 = arith.mulf %177, %178 : vector<8x32xf32>
    %180 = vector.broadcast %161 : vector<1x32xf32> to vector<8x32xf32>
    %181 = arith.addf %179, %180 : vector<8x32xf32>
    %c1 = arith.constant 1 : index
    %c0_87 = arith.constant 0 : index
    %c0_88 = arith.constant 0 : index
    %182 = vector.load %arg9[%c1, %c0_87, %c0_88] : memref<2x32x96xf32, #tpu.memory_space<vmem>>, vector<1x32x96xf32>
    %183 = vector.shape_cast %182 : vector<1x32x96xf32> to vector<32x96xf32>
    %cst_89 = arith.constant dense<0.000000e+00> : vector<8x96xf32>
    %184 = tpu.matmul %181, %183, %cst_89 {dimension_numbers = #tpu.dot_dimension_numbers<[1], [0], [0], [1], [0, 0, 1, 1], [], []>} : vector<8x32xf32>, vector<32x96xf32>, vector<8x96xf32> -> vector<8x96xf32>
    %c1_90 = arith.constant 1 : index
    %c0_91 = arith.constant 0 : index
    %c0_92 = arith.constant 0 : index
    %185 = vector.load %arg10[%c1_90, %c0_91, %c0_92] : memref<2x1x96xf32, #tpu.memory_space<vmem>>, vector<1x1x96xf32>
    %186 = vector.shape_cast %185 : vector<1x1x96xf32> to vector<1x96xf32>
    %187 = vector.broadcast %186 : vector<1x96xf32> to vector<8x96xf32>
    %188 = arith.addf %184, %187 : vector<8x96xf32>
    %189 = vector.extract_strided_slice %188 {offsets = [0, 0], sizes = [8, 8], strides = [1, 1]} : vector<8x96xf32> to vector<8x8xf32>
    %190 = vector.extract_strided_slice %188 {offsets = [0, 8], sizes = [8, 8], strides = [1, 1]} : vector<8x96xf32> to vector<8x8xf32>
    %191 = vector.extract_strided_slice %188 {offsets = [0, 16], sizes = [8, 8], strides = [1, 1]} : vector<8x96xf32> to vector<8x8xf32>
    %192 = vector.extract_strided_slice %188 {offsets = [0, 24], sizes = [8, 8], strides = [1, 1]} : vector<8x96xf32> to vector<8x8xf32>
    %193 = vector.shape_cast %189 : vector<8x8xf32> to vector<1x8x8xf32>
    %194 = vector.shape_cast %190 : vector<8x8xf32> to vector<1x8x8xf32>
    %195 = vector.shape_cast %191 : vector<8x8xf32> to vector<1x8x8xf32>
    %196 = vector.shape_cast %192 : vector<8x8xf32> to vector<1x8x8xf32>
    %197 = tpu.concatenate %193, %194, %195, %196 in 0 : vector<1x8x8xf32>, vector<1x8x8xf32>, vector<1x8x8xf32>, vector<1x8x8xf32> -> vector<4x8x8xf32>
    %198 = vector.extract_strided_slice %188 {offsets = [0, 32], sizes = [8, 8], strides = [1, 1]} : vector<8x96xf32> to vector<8x8xf32>
    %199 = vector.extract_strided_slice %188 {offsets = [0, 40], sizes = [8, 8], strides = [1, 1]} : vector<8x96xf32> to vector<8x8xf32>
    %200 = vector.extract_strided_slice %188 {offsets = [0, 48], sizes = [8, 8], strides = [1, 1]} : vector<8x96xf32> to vector<8x8xf32>
    %201 = vector.extract_strided_slice %188 {offsets = [0, 56], sizes = [8, 8], strides = [1, 1]} : vector<8x96xf32> to vector<8x8xf32>
    %202 = vector.shape_cast %198 : vector<8x8xf32> to vector<1x8x8xf32>
    %203 = vector.shape_cast %199 : vector<8x8xf32> to vector<1x8x8xf32>
    %204 = vector.shape_cast %200 : vector<8x8xf32> to vector<1x8x8xf32>
    %205 = vector.shape_cast %201 : vector<8x8xf32> to vector<1x8x8xf32>
    %206 = tpu.concatenate %202, %203, %204, %205 in 0 : vector<1x8x8xf32>, vector<1x8x8xf32>, vector<1x8x8xf32>, vector<1x8x8xf32> -> vector<4x8x8xf32>
    %207 = vector.extract_strided_slice %188 {offsets = [0, 64], sizes = [8, 8], strides = [1, 1]} : vector<8x96xf32> to vector<8x8xf32>
    %208 = vector.extract_strided_slice %188 {offsets = [0, 72], sizes = [8, 8], strides = [1, 1]} : vector<8x96xf32> to vector<8x8xf32>
    %209 = vector.extract_strided_slice %188 {offsets = [0, 80], sizes = [8, 8], strides = [1, 1]} : vector<8x96xf32> to vector<8x8xf32>
    %210 = vector.extract_strided_slice %188 {offsets = [0, 88], sizes = [8, 8], strides = [1, 1]} : vector<8x96xf32> to vector<8x8xf32>
    %211 = vector.shape_cast %207 : vector<8x8xf32> to vector<1x8x8xf32>
    %212 = vector.shape_cast %208 : vector<8x8xf32> to vector<1x8x8xf32>
    %213 = vector.shape_cast %209 : vector<8x8xf32> to vector<1x8x8xf32>
    %214 = vector.shape_cast %210 : vector<8x8xf32> to vector<1x8x8xf32>
    %215 = tpu.concatenate %211, %212, %213, %214 in 0 : vector<1x8x8xf32>, vector<1x8x8xf32>, vector<1x8x8xf32>, vector<1x8x8xf32> -> vector<4x8x8xf32>
    "tpu.trace_start"() <{level = 10 : i32, message = "nqd,nkd->nqk"}> : () -> ()
    %cst_93 = arith.constant dense<0.000000e+00> : vector<4x8x8xf32>
    %216 = tpu.matmul %197, %206, %cst_93 {dimension_numbers = #tpu.dot_dimension_numbers<[2], [2], [1], [1], [0, 0, 0, 1, 1, 1], [0], [0]>} : vector<4x8x8xf32>, vector<4x8x8xf32>, vector<4x8x8xf32> -> vector<4x8x8xf32>
    "tpu.trace_stop"() : () -> ()
    %cst_94 = arith.constant 0.353553385 : f32
    %217 = vector.broadcast %cst_94 : f32 to vector<4x8x8xf32>
    %218 = arith.mulf %216, %217 : vector<4x8x8xf32>
    %219 = vector.broadcast %47 : vector<1x1x8xf32> to vector<4x8x8xf32>
    %220 = arith.addf %218, %219 : vector<4x8x8xf32>
    %cst_95 = arith.constant dense<0xFF800000> : vector<4x8xf32>
    %221 = vector.multi_reduction <maximumf>, %220, %cst_95 [2] : vector<4x8x8xf32> to vector<4x8xf32>
    %222 = vector.shape_cast %221 : vector<4x8xf32> to vector<4x8x1xf32>
    %223 = vector.broadcast %222 : vector<4x8x1xf32> to vector<4x8x8xf32>
    %224 = arith.subf %220, %223 : vector<4x8x8xf32>
    %225 = math.exp %224 : vector<4x8x8xf32>
    %cst_96 = arith.constant dense<0.000000e+00> : vector<4x8xf32>
    %226 = vector.multi_reduction <add>, %225, %cst_96 [2] : vector<4x8x8xf32> to vector<4x8xf32>
    %227 = vector.shape_cast %226 : vector<4x8xf32> to vector<4x8x1xf32>
    %228 = vector.broadcast %227 : vector<4x8x1xf32> to vector<4x8x8xf32>
    %229 = arith.divf %225, %228 : vector<4x8x8xf32>
    "tpu.trace_start"() <{level = 10 : i32, message = "nqk,nkd->nqd"}> : () -> ()
    %cst_97 = arith.constant dense<0.000000e+00> : vector<4x8x8xf32>
    %230 = tpu.matmul %229, %215, %cst_97 {dimension_numbers = #tpu.dot_dimension_numbers<[2], [1], [1], [2], [0, 0, 0, 1, 1, 2], [0], [0]>} : vector<4x8x8xf32>, vector<4x8x8xf32>, vector<4x8x8xf32> -> vector<4x8x8xf32>
    "tpu.trace_stop"() : () -> ()
    %c1_98 = arith.constant 1 : index
    %c0_99 = arith.constant 0 : index
    %c0_100 = arith.constant 0 : index
    %c0_101 = arith.constant 0 : index
    %231 = vector.load %arg11[%c1_98, %c0_99, %c0_100, %c0_101] : memref<2x4x8x32xf32, #tpu.memory_space<vmem>>, vector<1x4x8x32xf32>
    %232 = vector.shape_cast %231 : vector<1x4x8x32xf32> to vector<4x8x32xf32>
    "tpu.trace_start"() <{level = 10 : i32, message = "nsd,ndh->nsh"}> : () -> ()
    %cst_102 = arith.constant dense<0.000000e+00> : vector<4x8x32xf32>
    %233 = tpu.matmul %230, %232, %cst_102 {dimension_numbers = #tpu.dot_dimension_numbers<[2], [1], [1], [2], [0, 0, 0, 1, 1, 2], [0], [0]>} : vector<4x8x8xf32>, vector<4x8x32xf32>, vector<4x8x32xf32> -> vector<4x8x32xf32>
    "tpu.trace_stop"() : () -> ()
    %cst_103 = arith.constant dense<0.000000e+00> : vector<8x32xf32>
    %234 = vector.multi_reduction <add>, %233, %cst_103 [0] : vector<4x8x32xf32> to vector<8x32xf32>
    %c1_104 = arith.constant 1 : index
    %c0_105 = arith.constant 0 : index
    %c0_106 = arith.constant 0 : index
    %235 = vector.load %arg12[%c1_104, %c0_105, %c0_106] : memref<2x1x32xf32, #tpu.memory_space<vmem>>, vector<1x1x32xf32>
    %236 = vector.shape_cast %235 : vector<1x1x32xf32> to vector<1x32xf32>
    %237 = vector.broadcast %236 : vector<1x32xf32> to vector<8x32xf32>
    %238 = arith.addf %234, %237 : vector<8x32xf32>
    %239 = arith.addf %238, %181 : vector<8x32xf32>
    %c1_107 = arith.constant 1 : index
    %c0_108 = arith.constant 0 : index
    %c0_109 = arith.constant 0 : index
    %240 = vector.load %arg13[%c1_107, %c0_108, %c0_109] : memref<2x1x32xf32, #tpu.memory_space<vmem>>, vector<1x1x32xf32>
    %241 = vector.shape_cast %240 : vector<1x1x32xf32> to vector<1x32xf32>
    %c1_110 = arith.constant 1 : index
    %c0_111 = arith.constant 0 : index
    %c0_112 = arith.constant 0 : index
    %242 = vector.load %arg14[%c1_110, %c0_111, %c0_112] : memref<2x1x32xf32, #tpu.memory_space<vmem>>, vector<1x1x32xf32>
    %243 = vector.shape_cast %242 : vector<1x1x32xf32> to vector<1x32xf32>
    %cst_113 = arith.constant dense<0.000000e+00> : vector<8xf32>
    %244 = vector.multi_reduction <add>, %239, %cst_113 [1] : vector<8x32xf32> to vector<8xf32>
    %245 = vector.shape_cast %244 : vector<8xf32> to vector<8x1xf32>
    %cst_114 = arith.constant 3.200000e+01 : f32
    %246 = vector.broadcast %cst_114 : f32 to vector<8x1xf32>
    %247 = arith.divf %245, %246 : vector<8x1xf32>
    %248 = vector.broadcast %247 : vector<8x1xf32> to vector<8x32xf32>
    %249 = arith.subf %239, %248 : vector<8x32xf32>
    %250 = arith.mulf %249, %249 : vector<8x32xf32>
    %cst_115 = arith.constant dense<0.000000e+00> : vector<8xf32>
    %251 = vector.multi_reduction <add>, %250, %cst_115 [1] : vector<8x32xf32> to vector<8xf32>
    %252 = vector.shape_cast %251 : vector<8xf32> to vector<8x1xf32>
    %cst_116 = arith.constant 3.200000e+01 : f32
    %253 = vector.broadcast %cst_116 : f32 to vector<8x1xf32>
    %254 = arith.divf %252, %253 : vector<8x1xf32>
    %cst_117 = arith.constant 9.99999996E-13 : f32
    %255 = vector.broadcast %cst_117 : f32 to vector<8x1xf32>
    %256 = arith.addf %254, %255 : vector<8x1xf32>
    %257 = math.rsqrt %256 : vector<8x1xf32>
    %258 = vector.broadcast %257 : vector<8x1xf32> to vector<8x32xf32>
    %259 = arith.mulf %249, %258 : vector<8x32xf32>
    %260 = vector.broadcast %241 : vector<1x32xf32> to vector<8x32xf32>
    %261 = arith.mulf %259, %260 : vector<8x32xf32>
    %262 = vector.broadcast %243 : vector<1x32xf32> to vector<8x32xf32>
    %263 = arith.addf %261, %262 : vector<8x32xf32>
    %c1_118 = arith.constant 1 : index
    %c0_119 = arith.constant 0 : index
    %c0_120 = arith.constant 0 : index
    %264 = vector.load %arg15[%c1_118, %c0_119, %c0_120] : memref<2x32x64xf32, #tpu.memory_space<vmem>>, vector<1x32x64xf32>
    %265 = vector.shape_cast %264 : vector<1x32x64xf32> to vector<32x64xf32>
    %cst_121 = arith.constant dense<0.000000e+00> : vector<8x64xf32>
    %266 = tpu.matmul %263, %265, %cst_121 {dimension_numbers = #tpu.dot_dimension_numbers<[1], [0], [0], [1], [0, 0, 1, 1], [], []>} : vector<8x32xf32>, vector<32x64xf32>, vector<8x64xf32> -> vector<8x64xf32>
    %c1_122 = arith.constant 1 : index
    %c0_123 = arith.constant 0 : index
    %c0_124 = arith.constant 0 : index
    %267 = vector.load %arg16[%c1_122, %c0_123, %c0_124] : memref<2x1x64xf32, #tpu.memory_space<vmem>>, vector<1x1x64xf32>
    %268 = vector.shape_cast %267 : vector<1x1x64xf32> to vector<1x64xf32>
    %269 = vector.broadcast %268 : vector<1x64xf32> to vector<8x64xf32>
    %270 = arith.addf %266, %269 : vector<8x64xf32>
    %cst_125 = arith.constant 5.000000e-01 : f32
    %271 = vector.broadcast %cst_125 : f32 to vector<8x64xf32>
    %272 = arith.mulf %271, %270 : vector<8x64xf32>
    %cst_126 = arith.constant 4.471500e-02 : f32
    %273 = vector.broadcast %cst_126 : f32 to vector<8x64xf32>
    %274 = arith.mulf %273, %270 : vector<8x64xf32>
    %275 = arith.mulf %274, %270 : vector<8x64xf32>
    %276 = arith.mulf %275, %270 : vector<8x64xf32>
    %277 = arith.addf %270, %276 : vector<8x64xf32>
    %cst_127 = arith.constant 0.797884583 : f32
    %278 = vector.broadcast %cst_127 : f32 to vector<8x64xf32>
    %279 = arith.mulf %278, %277 : vector<8x64xf32>
    %280 = math.tanh %279 : vector<8x64xf32>
    %cst_128 = arith.constant 1.000000e+00 : f32
    %281 = vector.broadcast %cst_128 : f32 to vector<8x64xf32>
    %282 = arith.addf %281, %280 : vector<8x64xf32>
    %283 = arith.mulf %272, %282 : vector<8x64xf32>
    %c1_129 = arith.constant 1 : index
    %c0_130 = arith.constant 0 : index
    %c0_131 = arith.constant 0 : index
    %284 = vector.load %arg17[%c1_129, %c0_130, %c0_131] : memref<2x64x32xf32, #tpu.memory_space<vmem>>, vector<1x64x32xf32>
    %285 = vector.shape_cast %284 : vector<1x64x32xf32> to vector<64x32xf32>
    %cst_132 = arith.constant dense<0.000000e+00> : vector<8x32xf32>
    %286 = tpu.matmul %283, %285, %cst_132 {dimension_numbers = #tpu.dot_dimension_numbers<[1], [0], [0], [1], [0, 0, 1, 1], [], []>} : vector<8x64xf32>, vector<64x32xf32>, vector<8x32xf32> -> vector<8x32xf32>
    %c1_133 = arith.constant 1 : index
    %c0_134 = arith.constant 0 : index
    %c0_135 = arith.constant 0 : index
    %287 = vector.load %arg18[%c1_133, %c0_134, %c0_135] : memref<2x1x32xf32, #tpu.memory_space<vmem>>, vector<1x1x32xf32>
    %288 = vector.shape_cast %287 : vector<1x1x32xf32> to vector<1x32xf32>
    %289 = vector.broadcast %288 : vector<1x32xf32> to vector<8x32xf32>
    %290 = arith.addf %286, %289 : vector<8x32xf32>
    %291 = arith.addf %290, %263 : vector<8x32xf32>
    %c1_136 = arith.constant 1 : index
    %c0_137 = arith.constant 0 : index
    %c0_138 = arith.constant 0 : index
    %292 = vector.load %arg19[%c1_136, %c0_137, %c0_138] : memref<2x1x32xf32, #tpu.memory_space<vmem>>, vector<1x1x32xf32>
    %293 = vector.shape_cast %292 : vector<1x1x32xf32> to vector<1x32xf32>
    %c1_139 = arith.constant 1 : index
    %c0_140 = arith.constant 0 : index
    %c0_141 = arith.constant 0 : index
    %294 = vector.load %arg20[%c1_139, %c0_140, %c0_141] : memref<2x1x32xf32, #tpu.memory_space<vmem>>, vector<1x1x32xf32>
    %295 = vector.shape_cast %294 : vector<1x1x32xf32> to vector<1x32xf32>
    %cst_142 = arith.constant dense<0.000000e+00> : vector<8xf32>
    %296 = vector.multi_reduction <add>, %291, %cst_142 [1] : vector<8x32xf32> to vector<8xf32>
    %297 = vector.shape_cast %296 : vector<8xf32> to vector<8x1xf32>
    %cst_143 = arith.constant 3.200000e+01 : f32
    %298 = vector.broadcast %cst_143 : f32 to vector<8x1xf32>
    %299 = arith.divf %297, %298 : vector<8x1xf32>
    %300 = vector.broadcast %299 : vector<8x1xf32> to vector<8x32xf32>
    %301 = arith.subf %291, %300 : vector<8x32xf32>
    %302 = arith.mulf %301, %301 : vector<8x32xf32>
    %cst_144 = arith.constant dense<0.000000e+00> : vector<8xf32>
    %303 = vector.multi_reduction <add>, %302, %cst_144 [1] : vector<8x32xf32> to vector<8xf32>
    %304 = vector.shape_cast %303 : vector<8xf32> to vector<8x1xf32>
    %cst_145 = arith.constant 3.200000e+01 : f32
    %305 = vector.broadcast %cst_145 : f32 to vector<8x1xf32>
    %306 = arith.divf %304, %305 : vector<8x1xf32>
    %cst_146 = arith.constant 9.99999996E-13 : f32
    %307 = vector.broadcast %cst_146 : f32 to vector<8x1xf32>
    %308 = arith.addf %306, %307 : vector<8x1xf32>
    %309 = math.rsqrt %308 : vector<8x1xf32>
    %310 = vector.broadcast %309 : vector<8x1xf32> to vector<8x32xf32>
    %311 = arith.mulf %301, %310 : vector<8x32xf32>
    %312 = vector.broadcast %293 : vector<1x32xf32> to vector<8x32xf32>
    %313 = arith.mulf %311, %312 : vector<8x32xf32>
    %314 = vector.broadcast %295 : vector<1x32xf32> to vector<8x32xf32>
    %315 = arith.addf %313, %314 : vector<8x32xf32>
    %c0_147 = arith.constant 0 : index
    %c0_148 = arith.constant 0 : index
    %316 = vector.load %arg21[%c0_147, %c0_148] : memref<32x128xf32, #tpu.memory_space<vmem>>, vector<32x128xf32>
    %cst_149 = arith.constant dense<0.000000e+00> : vector<8x128xf32>
    %317 = tpu.matmul %315, %316, %cst_149 {dimension_numbers = #tpu.dot_dimension_numbers<[1], [0], [0], [1], [0, 0, 1, 1], [], []>} : vector<8x32xf32>, vector<32x128xf32>, vector<8x128xf32> -> vector<8x128xf32>
    %c0_150 = arith.constant 0 : index
    %c0_151 = arith.constant 0 : index
    %318 = vector.load %arg22[%c0_150, %c0_151] : memref<1x128xf32, #tpu.memory_space<vmem>>, vector<1x128xf32>
    %319 = vector.broadcast %318 : vector<1x128xf32> to vector<8x128xf32>
    %320 = arith.addf %317, %319 : vector<8x128xf32>
    %c0_152 = arith.constant 0 : index
    %c0_153 = arith.constant 0 : index
    %c0_154 = arith.constant 0 : index
    %321 = vector.load %arg23[%c0_152, %c0_153, %c0_154] : memref<1x8x128xf32, #tpu.memory_space<vmem>>, vector<1x8x128xf32>
    %322 = vector.shape_cast %321 : vector<1x8x128xf32> to vector<8x128xf32>
    %323 = vector.shape_cast %320 : vector<8x128xf32> to vector<1x8x128xf32>
    tpu.vector_store %arg23[%c0_152, %c0_153, %c0_154], %323 {strides = array<i32>} : memref<1x8x128xf32, #tpu.memory_space<vmem>>, vector<1x8x128xf32>,
    return
  }
  func.func @transform_0(%arg0: i32) -> (i32, i32, i32) {
    %c0_i32 = arith.constant 0 : i32
    %c0_i32_0 = arith.constant 0 : i32
    %c0_i32_1 = arith.constant 0 : i32
    return %arg0, %c0_i32, %c0_i32_0 : i32, i32, i32
  }
  func.func @transform_1(%arg0: i32) -> (i32, i32, i32) {
    %c0_i32 = arith.constant 0 : i32
    %c0_i32_0 = arith.constant 0 : i32
    %c0_i32_1 = arith.constant 0 : i32
    return %arg0, %c0_i32, %c0_i32_0 : i32, i32, i32
  }
  func.func @transform_2(%arg0: i32) -> (i32, i32, i32) {
    %c0_i32 = arith.constant 0 : i32
    %c0_i32_0 = arith.constant 0 : i32
    %c0_i32_1 = arith.constant 0 : i32
    return %arg0, %c0_i32, %c0_i32_0 : i32, i32, i32
  }
  func.func @transform_3(%arg0: i32) -> (i32, i32) {
    %c0_i32 = arith.constant 0 : i32
    %c0_i32_0 = arith.constant 0 : i32
    %c0_i32_1 = arith.constant 0 : i32
    return %c0_i32, %c0_i32_0 : i32, i32
  }
  func.func @transform_4(%arg0: i32) -> (i32, i32) {
    %c0_i32 = arith.constant 0 : i32
    %c0_i32_0 = arith.constant 0 : i32
    %c0_i32_1 = arith.constant 0 : i32
    return %c0_i32, %c0_i32_0 : i32, i32
  }
  func.func @transform_5(%arg0: i32) -> (i32, i32) {
    %c0_i32 = arith.constant 0 : i32
    %c0_i32_0 = arith.constant 0 : i32
    %c0_i32_1 = arith.constant 0 : i32
    return %c0_i32, %c0_i32_0 : i32, i32
  }
  func.func @transform_6(%arg0: i32) -> (i32, i32) {
    %c0_i32 = arith.constant 0 : i32
    %c0_i32_0 = arith.constant 0 : i32
    %c0_i32_1 = arith.constant 0 : i32
    return %c0_i32, %c0_i32_0 : i32, i32
  }
  func.func @transform_7(%arg0: i32) -> (i32, i32) {
    %c0_i32 = arith.constant 0 : i32
    %c0_i32_0 = arith.constant 0 : i32
    %c0_i32_1 = arith.constant 0 : i32
    return %c0_i32, %c0_i32_0 : i32, i32
  }
  func.func @transform_8(%arg0: i32) -> (i32, i32, i32) {
    %c0_i32 = arith.constant 0 : i32
    %c0_i32_0 = arith.constant 0 : i32
    %c0_i32_1 = arith.constant 0 : i32
    %c0_i32_2 = arith.constant 0 : i32
    return %c0_i32, %c0_i32_0, %c0_i32_1 : i32, i32, i32
  }
  func.func @transform_9(%arg0: i32) -> (i32, i32, i32) {
    %c0_i32 = arith.constant 0 : i32
    %c0_i32_0 = arith.constant 0 : i32
    %c0_i32_1 = arith.constant 0 : i32
    %c0_i32_2 = arith.constant 0 : i32
    return %c0_i32, %c0_i32_0, %c0_i32_1 : i32, i32, i32
  }
  func.func @transform_10(%arg0: i32) -> (i32, i32, i32, i32) {
    %c0_i32 = arith.constant 0 : i32
    %c0_i32_0 = arith.constant 0 : i32
    %c0_i32_1 = arith.constant 0 : i32
    %c0_i32_2 = arith.constant 0 : i32
    %c0_i32_3 = arith.constant 0 : i32
    return %c0_i32, %c0_i32_0, %c0_i32_1, %c0_i32_2 : i32, i32, i32, i32
  }
  func.func @transform_11(%arg0: i32) -> (i32, i32, i32) {
    %c0_i32 = arith.constant 0 : i32
    %c0_i32_0 = arith.constant 0 : i32
    %c0_i32_1 = arith.constant 0 : i32
    %c0_i32_2 = arith.constant 0 : i32
    return %c0_i32, %c0_i32_0, %c0_i32_1 : i32, i32, i32
  }
  func.func @transform_12(%arg0: i32) -> (i32, i32, i32) {
    %c0_i32 = arith.constant 0 : i32
    %c0_i32_0 = arith.constant 0 : i32
    %c0_i32_1 = arith.constant 0 : i32
    %c0_i32_2 = arith.constant 0 : i32
    return %c0_i32, %c0_i32_0, %c0_i32_1 : i32, i32, i32
  }
  func.func @transform_13(%arg0: i32) -> (i32, i32, i32) {
    %c0_i32 = arith.constant 0 : i32
    %c0_i32_0 = arith.constant 0 : i32
    %c0_i32_1 = arith.constant 0 : i32
    %c0_i32_2 = arith.constant 0 : i32
    return %c0_i32, %c0_i32_0, %c0_i32_1 : i32, i32, i32
  }
  func.func @transform_14(%arg0: i32) -> (i32, i32, i32) {
    %c0_i32 = arith.constant 0 : i32
    %c0_i32_0 = arith.constant 0 : i32
    %c0_i32_1 = arith.constant 0 : i32
    %c0_i32_2 = arith.constant 0 : i32
    return %c0_i32, %c0_i32_0, %c0_i32_1 : i32, i32, i32
  }
  func.func @transform_15(%arg0: i32) -> (i32, i32, i32) {
    %c0_i32 = arith.constant 0 : i32
    %c0_i32_0 = arith.constant 0 : i32
    %c0_i32_1 = arith.constant 0 : i32
    %c0_i32_2 = arith.constant 0 : i32
    return %c0_i32, %c0_i32_0, %c0_i32_1 : i32, i32, i32
  }
  func.func @transform_16(%arg0: i32) -> (i32, i32, i32) {
    %c0_i32 = arith.constant 0 : i32
    %c0_i32_0 = arith.constant 0 : i32
    %c0_i32_1 = arith.constant 0 : i32
    %c0_i32_2 = arith.constant 0 : i32
    return %c0_i32, %c0_i32_0, %c0_i32_1 : i32, i32, i32
  }
  func.func @transform_17(%arg0: i32) -> (i32, i32, i32) {
    %c0_i32 = arith.constant 0 : i32
    %c0_i32_0 = arith.constant 0 : i32
    %c0_i32_1 = arith.constant 0 : i32
    %c0_i32_2 = arith.constant 0 : i32
    return %c0_i32, %c0_i32_0, %c0_i32_1 : i32, i32, i32
  }
  func.func @transform_18(%arg0: i32) -> (i32, i32, i32) {
    %c0_i32 = arith.constant 0 : i32
    %c0_i32_0 = arith.constant 0 : i32
    %c0_i32_1 = arith.constant 0 : i32
    %c0_i32_2 = arith.constant 0 : i32
    return %c0_i32, %c0_i32_0, %c0_i32_1 : i32, i32, i32
  }
  func.func @transform_19(%arg0: i32) -> (i32, i32, i32) {
    %c0_i32 = arith.constant 0 : i32
    %c0_i32_0 = arith.constant 0 : i32
    %c0_i32_1 = arith.constant 0 : i32
    %c0_i32_2 = arith.constant 0 : i32
    return %c0_i32, %c0_i32_0, %c0_i32_1 : i32, i32, i32
  }
  func.func @transform_20(%arg0: i32) -> (i32, i32) {
    %c0_i32 = arith.constant 0 : i32
    %c0_i32_0 = arith.constant 0 : i32
    %c0_i32_1 = arith.constant 0 : i32
    return %c0_i32, %c0_i32_0 : i32, i32
  }
  func.func @transform_21(%arg0: i32) -> (i32, i32) {
    %c0_i32 = arith.constant 0 : i32
    %c0_i32_0 = arith.constant 0 : i32
    %c0_i32_1 = arith.constant 0 : i32
    return %c0_i32, %c0_i32_0 : i32, i32
  }
  func.func @transform_22(%arg0: i32) -> (i32, i32, i32) {
    %c0_i32 = arith.constant 0 : i32
    %c0_i32_0 = arith.constant 0 : i32
    %c0_i32_1 = arith.constant 0 : i32
    return %arg0, %c0_i32, %c0_i32_0 : i32, i32, i32
  }
}

</mosaic_0001>

<llo_original>
// kernel: bert_mrc_forward.1
$region0: #{bert_mrc_forward.1}
  #allocation0 [shape = 'u32[]', space=smem, size = 0x4, offset = 0x4, fixed_abs, tag = 'smem constant byte address 0x4 - core index']
  #allocation1 [shape = 'u32[72,128]{1,0:T(1,128)}', space=vmem, size = 0x9000, scoped, tag = 'internal scratch']
  %s0 = inlined_call_operand.vmem [shape: s32[2,8,1], index: 0, kind: input, shape index: {}]
  %s1 = inlined_call_operand.vmem [shape: s32[2,8,1], index: 1, kind: input, shape index: {}]
  %s2 = inlined_call_operand.vmem [shape: f32[2,1,8], index: 2, kind: input, shape index: {}]
  %s3 = inlined_call_operand.vmem [shape: f32[100,32], index: 3, kind: input, shape index: {}]
  %s4 = inlined_call_operand.vmem [shape: f32[64,32], index: 4, kind: input, shape index: {}]
  %s5 = inlined_call_operand.vmem [shape: f32[2,32], index: 5, kind: input, shape index: {}]
  %s6 = inlined_call_operand.vmem [shape: f32[1,32], index: 6, kind: input, shape index: {}]
  %s7 = inlined_call_operand.vmem [shape: f32[1,32], index: 7, kind: input, shape index: {}]
  %s8 = inlined_call_operand.vmem [shape: f32[2,32,96], index: 8, kind: input, shape index: {}]
  %s9 = inlined_call_operand.vmem [shape: f32[2,1,96], index: 9, kind: input, shape index: {}]
  %s10 = inlined_call_operand.vmem [shape: f32[2,4,8,32], index: 10, kind: input, shape index: {}]
  %s11 = inlined_call_operand.vmem [shape: f32[2,1,32], index: 11, kind: input, shape index: {}]
  %s12 = inlined_call_operand.vmem [shape: f32[2,1,32], index: 12, kind: input, shape index: {}]
  %s13 = inlined_call_operand.vmem [shape: f32[2,1,32], index: 13, kind: input, shape index: {}]
  %s14 = inlined_call_operand.vmem [shape: f32[2,32,64], index: 14, kind: input, shape index: {}]
  %s15 = inlined_call_operand.vmem [shape: f32[2,1,64], index: 15, kind: input, shape index: {}]
  %s16 = inlined_call_operand.vmem [shape: f32[2,64,32], index: 16, kind: input, shape index: {}]
  %s17 = inlined_call_operand.vmem [shape: f32[2,1,32], index: 17, kind: input, shape index: {}]
  %s18 = inlined_call_operand.vmem [shape: f32[2,1,32], index: 18, kind: input, shape index: {}]
  %s19 = inlined_call_operand.vmem [shape: f32[2,1,32], index: 19, kind: input, shape index: {}]
  %s20 = inlined_call_operand.vmem [shape: f32[32,128], index: 20, kind: input, shape index: {}]
  %s21 = inlined_call_operand.vmem [shape: f32[1,128], index: 21, kind: input, shape index: {}]
  %s22 = inlined_call_operand.vmem [shape: f32[2,8,128], index: 22, kind: output, shape index: {}]
  %s23 = sld [smem:[#allocation0]]
  $region121: #{bert_mrc_forward.1} parent=0
    _
  %s25 = ssub.s32 1, %s23
  %s26 = scalar_select 0, %s25, %s23
  loop: start=0, step=1, limit=4
  $region2: #{bert_mrc_forward.1} parent=0 // loop_pre_header
    _
  $region3: #{bert_mrc_forward.1} parent=0 // loop_header
    %s28 = sphi 0, %s32
    %p29 = scmp.ge.s32.totalorder %s28, 4
    %s38 = sphi 0, %s40
    %s41 = sphi 0, %s38
    %s42 = sphi 0, %s41
    %s58 = sphi 0, %s42
    %s64 = sphi 0, %s66
    %s67 = sphi 0, %s64
    %s68 = sphi 0, %s67
    %s84 = sphi 0, %s68
    %s90 = sphi 0, %s92
    %s93 = sphi 0, %s90
    %s94 = sphi 0, %s93
    %s110 = sphi 0, %s94
    %s114 = sphi 0, %s114
    %s116 = sphi 0, %s114
    %s117 = sphi 0, %s116
    %s131 = sphi 0, %s117
    %s135 = sphi 0, %s135
    %s137 = sphi 0, %s135
    %s138 = sphi 0, %s137
    %s152 = sphi 0, %s138
    %s156 = sphi 0, %s156
    %s158 = sphi 0, %s156
    %s159 = sphi 0, %s158
    %s173 = sphi 0, %s159
    %s177 = sphi 0, %s177
    %s179 = sphi 0, %s177
    %s180 = sphi 0, %s179
    %s194 = sphi 0, %s180
    %s198 = sphi 0, %s198
    %s200 = sphi 0, %s198
    %s201 = sphi 0, %s200
    %s215 = sphi 0, %s201
    %s219 = sphi 0, %s219
    %s221 = sphi 0, %s219
    %s222 = sphi 0, %s221
    %s236 = sphi 0, %s222
    %s240 = sphi 0, %s240
    %s242 = sphi 0, %s240
    %s243 = sphi 0, %s242
    %s257 = sphi 0, %s243
    %s261 = sphi 0, %s261
    %s263 = sphi 0, %s261
    %s264 = sphi 0, %s263
    %s278 = sphi 0, %s264
    %s282 = sphi 0, %s282
    %s284 = sphi 0, %s282
    %s285 = sphi 0, %s284
    %s299 = sphi 0, %s285
    %s303 = sphi 0, %s303
    %s305 = sphi 0, %s303
    %s306 = sphi 0, %s305
    %s320 = sphi 0, %s306
    %s324 = sphi 0, %s324
    %s326 = sphi 0, %s324
    %s327 = sphi 0, %s326
    %s341 = sphi 0, %s327
    %s345 = sphi 0, %s345
    %s347 = sphi 0, %s345
    %s348 = sphi 0, %s347
    %s362 = sphi 0, %s348
    %s366 = sphi 0, %s366
    %s368 = sphi 0, %s366
    %s369 = sphi 0, %s368
    %s383 = sphi 0, %s369
    %s387 = sphi 0, %s387
    %s389 = sphi 0, %s387
    %s390 = sphi 0, %s389
    %s404 = sphi 0, %s390
    %s408 = sphi 0, %s408
    %s410 = sphi 0, %s408
    %s411 = sphi 0, %s410
    %s425 = sphi 0, %s411
    %s429 = sphi 0, %s429
    %s431 = sphi 0, %s429
    %s432 = sphi 0, %s431
    %s446 = sphi 0, %s432
    %s450 = sphi 0, %s450
    %s452 = sphi 0, %s450
    %s453 = sphi 0, %s452
    %s467 = sphi 0, %s453
    %s471 = sphi 0, %s471
    %s473 = sphi 0, %s471
    %s474 = sphi 0, %s473
    %s488 = sphi 0, %s474
    %s492 = sphi 0, %s492
    %s494 = sphi 0, %s492
    %s495 = sphi 0, %s494
    %s509 = sphi 0, %s495
    %s515 = sphi 0, %s517
    %s518 = sphi 0, %s515
    %s519 = sphi 0, %s518
    %s535 = sphi 0, %s519
  $region4: #{bert_mrc_forward.1} parent=0 // loop_header_branch
    %31 = sbr.rel (%p29) target = $region8
  $region5: #{bert_mrc_forward.1} parent=0 // loop_body
    %s33 = ssub.s32 %s28, 1
    %s34 = ssub.s32 %s28, 2
    %s35 = sadd.s32 %s28, 1
    %s36 = ssub.s32 %s28, %s35
    %p37 = scmp.eq.s32.totalorder %s36, 0
    %s39 = sadd.s32 %s38, 1
    %s40 = scalar_select %p37, %s38, %s39
    %p43 = pneg %p37
    %p44 = scmp.eq.s32.totalorder %s28, 1
    %p45 = por %p43, %p44
    %p46 = scmp.ne.s32.totalorder %s38, %s41
    %p47 = scmp.eq.s32.totalorder %s28, 0
    %p48 = por %p46, %p47
    %p49 = scmp.ne.s32.totalorder %s38, %s41
    %p50 = scmp.eq.s32.totalorder %s33, 1
    %p51 = por %p49, %p50
    %p52 = scmp.ne.s32.totalorder %s41, %s42
    %p53 = scmp.eq.s32.totalorder %s33, 0
    %p54 = por %p52, %p53
    %p55 = scmp.ne.s32.totalorder %s41, %s42
    %p56 = scmp.eq.s32.totalorder %s34, 1
    %p57 = por %p55, %p56
    %p59 = scmp.ne.s32.totalorder %s42, %s58
    %p60 = scmp.eq.s32.totalorder %s34, 0
    %p61 = por %p59, %p60
    %s62 = ssub.s32 %s28, %s35
    %p63 = scmp.eq.s32.totalorder %s62, 0
    %s65 = sadd.s32 %s64, 1
    %s66 = scalar_select %p63, %s64, %s65
    %p69 = pneg %p63
    %p70 = scmp.eq.s32.totalorder %s28, 1
    %p71 = por %p69, %p70
    %p72 = scmp.ne.s32.totalorder %s64, %s67
    %p73 = scmp.eq.s32.totalorder %s28, 0
    %p74 = por %p72, %p73
    %p75 = scmp.ne.s32.totalorder %s64, %s67
    %p76 = scmp.eq.s32.totalorder %s33, 1
    %p77 = por %p75, %p76
    %p78 = scmp.ne.s32.totalorder %s67, %s68
    %p79 = scmp.eq.s32.totalorder %s33, 0
    %p80 = por %p78, %p79
    %p81 = scmp.ne.s32.totalorder %s67, %s68
    %p82 = scmp.eq.s32.totalorder %s34, 1
    %p83 = por %p81, %p82
    %p85 = scmp.ne.s32.totalorder %s68, %s84
    %p86 = scmp.eq.s32.totalorder %s34, 0
    %p87 = por %p85, %p86
    %s88 = ssub.s32 %s28, %s35
    %p89 = scmp.eq.s32.totalorder %s88, 0
    %s91 = sadd.s32 %s90, 1
    %s92 = scalar_select %p89, %s90, %s91
    %p95 = pneg %p89
    %p96 = scmp.eq.s32.totalorder %s28, 1
    %p97 = por %p95, %p96
    %p98 = scmp.ne.s32.totalorder %s90, %s93
    %p99 = scmp.eq.s32.totalorder %s28, 0
    %p100 = por %p98, %p99
    %p101 = scmp.ne.s32.totalorder %s90, %s93
    %p102 = scmp.eq.s32.totalorder %s33, 1
    %p103 = por %p101, %p102
    %p104 = scmp.ne.s32.totalorder %s93, %s94
    %p105 = scmp.eq.s32.totalorder %s33, 0
    %p106 = por %p104, %p105
    %p107 = scmp.ne.s32.totalorder %s93, %s94
    %p108 = scmp.eq.s32.totalorder %s34, 1
    %p109 = por %p107, %p108
    %p111 = scmp.ne.s32.totalorder %s94, %s110
    %p112 = scmp.eq.s32.totalorder %s34, 0
    %p113 = por %p111, %p112
    %s115 = sadd.s32 %s114, 1
    %p118 = scmp.eq.s32.totalorder %s28, 1
    %p119 = scmp.ne.s32.totalorder %s114, %s116
    %p120 = scmp.eq.s32.totalorder %s28, 0
    %p121 = por %p119, %p120
    %p122 = scmp.ne.s32.totalorder %s114, %s116
    %p123 = scmp.eq.s32.totalorder %s33, 1
    %p124 = por %p122, %p123
    %p125 = scmp.ne.s32.totalorder %s116, %s117
    %p126 = scmp.eq.s32.totalorder %s33, 0
    %p127 = por %p125, %p126
    %p128 = scmp.ne.s32.totalorder %s116, %s117
    %p129 = scmp.eq.s32.totalorder %s34, 1
    %p130 = por %p128, %p129
    %p132 = scmp.ne.s32.totalorder %s117, %s131
    %p133 = scmp.eq.s32.totalorder %s34, 0
    %p134 = por %p132, %p133
    %s136 = sadd.s32 %s135, 1
    %p139 = scmp.eq.s32.totalorder %s28, 1
    %p140 = scmp.ne.s32.totalorder %s135, %s137
    %p141 = scmp.eq.s32.totalorder %s28, 0
    %p142 = por %p140, %p141
    %p143 = scmp.ne.s32.totalorder %s135, %s137
    %p144 = scmp.eq.s32.totalorder %s33, 1
    %p145 = por %p143, %p144
    %p146 = scmp.ne.s32.totalorder %s137, %s138
    %p147 = scmp.eq.s32.totalorder %s33, 0
    %p148 = por %p146, %p147
    %p149 = scmp.ne.s32.totalorder %s137, %s138
    %p150 = scmp.eq.s32.totalorder %s34, 1
    %p151 = por %p149, %p150
    %p153 = scmp.ne.s32.totalorder %s138, %s152
    %p154 = scmp.eq.s32.totalorder %s34, 0
    %p155 = por %p153, %p154
    %s157 = sadd.s32 %s156, 1
    %p160 = scmp.eq.s32.totalorder %s28, 1
    %p161 = scmp.ne.s32.totalorder %s156, %s158
    %p162 = scmp.eq.s32.totalorder %s28, 0
    %p163 = por %p161, %p162
    %p164 = scmp.ne.s32.totalorder %s156, %s158
    %p165 = scmp.eq.s32.totalorder %s33, 1
    %p166 = por %p164, %p165
    %p167 = scmp.ne.s32.totalorder %s158, %s159
    %p168 = scmp.eq.s32.totalorder %s33, 0
    %p169 = por %p167, %p168
    %p170 = scmp.ne.s32.totalorder %s158, %s159
    %p171 = scmp.eq.s32.totalorder %s34, 1
    %p172 = por %p170, %p171
    %p174 = scmp.ne.s32.totalorder %s159, %s173
    %p175 = scmp.eq.s32.totalorder %s34, 0
    %p176 = por %p174, %p175
    %s178 = sadd.s32 %s177, 1
    %p181 = scmp.eq.s32.totalorder %s28, 1
    %p182 = scmp.ne.s32.totalorder %s177, %s179
    %p183 = scmp.eq.s32.totalorder %s28, 0
    %p184 = por %p182, %p183
    %p185 = scmp.ne.s32.totalorder %s177, %s179
    %p186 = scmp.eq.s32.totalorder %s33, 1
    %p187 = por %p185, %p186
    %p188 = scmp.ne.s32.totalorder %s179, %s180
    %p189 = scmp.eq.s32.totalorder %s33, 0
    %p190 = por %p188, %p189
    %p191 = scmp.ne.s32.totalorder %s179, %s180
    %p192 = scmp.eq.s32.totalorder %s34, 1
    %p193 = por %p191, %p192
    %p195 = scmp.ne.s32.totalorder %s180, %s194
    %p196 = scmp.eq.s32.totalorder %s34, 0
    %p197 = por %p195, %p196
    %s199 = sadd.s32 %s198, 1
    %p202 = scmp.eq.s32.totalorder %s28, 1
    %p203 = scmp.ne.s32.totalorder %s198, %s200
    %p204 = scmp.eq.s32.totalorder %s28, 0
    %p205 = por %p203, %p204
    %p206 = scmp.ne.s32.totalorder %s198, %s200
    %p207 = scmp.eq.s32.totalorder %s33, 1
    %p208 = por %p206, %p207
    %p209 = scmp.ne.s32.totalorder %s200, %s201
    %p210 = scmp.eq.s32.totalorder %s33, 0
    %p211 = por %p209, %p210
    %p212 = scmp.ne.s32.totalorder %s200, %s201
    %p213 = scmp.eq.s32.totalorder %s34, 1
    %p214 = por %p212, %p213
    %p216 = scmp.ne.s32.totalorder %s201, %s215
    %p217 = scmp.eq.s32.totalorder %s34, 0
    %p218 = por %p216, %p217
    %s220 = sadd.s32 %s219, 1
    %p223 = scmp.eq.s32.totalorder %s28, 1
    %p224 = scmp.ne.s32.totalorder %s219, %s221
    %p225 = scmp.eq.s32.totalorder %s28, 0
    %p226 = por %p224, %p225
    %p227 = scmp.ne.s32.totalorder %s219, %s221
    %p228 = scmp.eq.s32.totalorder %s33, 1
    %p229 = por %p227, %p228
    %p230 = scmp.ne.s32.totalorder %s221, %s222
    %p231 = scmp.eq.s32.totalorder %s33, 0
    %p232 = por %p230, %p231
    %p233 = scmp.ne.s32.totalorder %s221, %s222
    %p234 = scmp.eq.s32.totalorder %s34, 1
    %p235 = por %p233, %p234
    %p237 = scmp.ne.s32.totalorder %s222, %s236
    %p238 = scmp.eq.s32.totalorder %s34, 0
    %p239 = por %p237, %p238
    %s241 = sadd.s32 %s240, 1
    %p244 = scmp.eq.s32.totalorder %s28, 1
    %p245 = scmp.ne.s32.totalorder %s240, %s242
    %p246 = scmp.eq.s32.totalorder %s28, 0
    %p247 = por %p245, %p246
    %p248 = scmp.ne.s32.totalorder %s240, %s242
    %p249 = scmp.eq.s32.totalorder %s33, 1
    %p250 = por %p248, %p249
    %p251 = scmp.ne.s32.totalorder %s242, %s243
    %p252 = scmp.eq.s32.totalorder %s33, 0
    %p253 = por %p251, %p252
    %p254 = scmp.ne.s32.totalorder %s242, %s243
    %p255 = scmp.eq.s32.totalorder %s34, 1
    %p256 = por %p254, %p255
    %p258 = scmp.ne.s32.totalorder %s243, %s257
    %p259 = scmp.eq.s32.totalorder %s34, 0
    %p260 = por %p258, %p259
    %s262 = sadd.s32 %s261, 1
    %p265 = scmp.eq.s32.totalorder %s28, 1
    %p266 = scmp.ne.s32.totalorder %s261, %s263
    %p267 = scmp.eq.s32.totalorder %s28, 0
    %p268 = por %p266, %p267
    %p269 = scmp.ne.s32.totalorder %s261, %s263
    %p270 = scmp.eq.s32.totalorder %s33, 1
    %p271 = por %p269, %p270
    %p272 = scmp.ne.s32.totalorder %s263, %s264
    %p273 = scmp.eq.s32.totalorder %s33, 0
    %p274 = por %p272, %p273
    %p275 = scmp.ne.s32.totalorder %s263, %s264
    %p276 = scmp.eq.s32.totalorder %s34, 1
    %p277 = por %p275, %p276
    %p279 = scmp.ne.s32.totalorder %s264, %s278
    %p280 = scmp.eq.s32.totalorder %s34, 0
    %p281 = por %p279, %p280
    %s283 = sadd.s32 %s282, 1
    %p286 = scmp.eq.s32.totalorder %s28, 1
    %p287 = scmp.ne.s32.totalorder %s282, %s284
    %p288 = scmp.eq.s32.totalorder %s28, 0
    %p289 = por %p287, %p288
    %p290 = scmp.ne.s32.totalorder %s282, %s284
    %p291 = scmp.eq.s32.totalorder %s33, 1
    %p292 = por %p290, %p291
    %p293 = scmp.ne.s32.totalorder %s284, %s285
    %p294 = scmp.eq.s32.totalorder %s33, 0
    %p295 = por %p293, %p294
    %p296 = scmp.ne.s32.totalorder %s284, %s285
    %p297 = scmp.eq.s32.totalorder %s34, 1
    %p298 = por %p296, %p297
    %p300 = scmp.ne.s32.totalorder %s285, %s299
    %p301 = scmp.eq.s32.totalorder %s34, 0
    %p302 = por %p300, %p301
    %s304 = sadd.s32 %s303, 1
    %p307 = scmp.eq.s32.totalorder %s28, 1
    %p308 = scmp.ne.s32.totalorder %s303, %s305
    %p309 = scmp.eq.s32.totalorder %s28, 0
    %p310 = por %p308, %p309
    %p311 = scmp.ne.s32.totalorder %s303, %s305
    %p312 = scmp.eq.s32.totalorder %s33, 1
    %p313 = por %p311, %p312
    %p314 = scmp.ne.s32.totalorder %s305, %s306
    %p315 = scmp.eq.s32.totalorder %s33, 0
    %p316 = por %p314, %p315
    %p317 = scmp.ne.s32.totalorder %s305, %s306
    %p318 = scmp.eq.s32.totalorder %s34, 1
    %p319 = por %p317, %p318
    %p321 = scmp.ne.s32.totalorder %s306, %s320
    %p322 = scmp.eq.s32.totalorder %s34, 0
    %p323 = por %p321, %p322
    %s325 = sadd.s32 %s324, 1
    %p328 = scmp.eq.s32.totalorder %s28, 1
    %p329 = scmp.ne.s32.totalorder %s324, %s326
    %p330 = scmp.eq.s32.totalorder %s28, 0
    %p331 = por %p329, %p330
    %p332 = scmp.ne.s32.totalorder %s324, %s326
    %p333 = scmp.eq.s32.totalorder %s33, 1
    %p334 = por %p332, %p333
    %p335 = scmp.ne.s32.totalorder %s326, %s327
    %p336 = scmp.eq.s32.totalorder %s33, 0
    %p337 = por %p335, %p336
    %p338 = scmp.ne.s32.totalorder %s326, %s327
    %p339 = scmp.eq.s32.totalorder %s34, 1
    %p340 = por %p338, %p339
    %p342 = scmp.ne.s32.totalorder %s327, %s341
    %p343 = scmp.eq.s32.totalorder %s34, 0
    %p344 = por %p342, %p343
    %s346 = sadd.s32 %s345, 1
    %p349 = scmp.eq.s32.totalorder %s28, 1
    %p350 = scmp.ne.s32.totalorder %s345, %s347
    %p351 = scmp.eq.s32.totalorder %s28, 0
    %p352 = por %p350, %p351
    %p353 = scmp.ne.s32.totalorder %s345, %s347
    %p354 = scmp.eq.s32.totalorder %s33, 1
    %p355 = por %p353, %p354
    %p356 = scmp.ne.s32.totalorder %s347, %s348
    %p357 = scmp.eq.s32.totalorder %s33, 0
    %p358 = por %p356, %p357
    %p359 = scmp.ne.s32.totalorder %s347, %s348
    %p360 = scmp.eq.s32.totalorder %s34, 1
    %p361 = por %p359, %p360
    %p363 = scmp.ne.s32.totalorder %s348, %s362
    %p364 = scmp.eq.s32.totalorder %s34, 0
    %p365 = por %p363, %p364
    %s367 = sadd.s32 %s366, 1
    %p370 = scmp.eq.s32.totalorder %s28, 1
    %p371 = scmp.ne.s32.totalorder %s366, %s368
    %p372 = scmp.eq.s32.totalorder %s28, 0
    %p373 = por %p371, %p372
    %p374 = scmp.ne.s32.totalorder %s366, %s368
    %p375 = scmp.eq.s32.totalorder %s33, 1
    %p376 = por %p374, %p375
    %p377 = scmp.ne.s32.totalorder %s368, %s369
    %p378 = scmp.eq.s32.totalorder %s33, 0
    %p379 = por %p377, %p378
    %p380 = scmp.ne.s32.totalorder %s368, %s369
    %p381 = scmp.eq.s32.totalorder %s34, 1
    %p382 = por %p380, %p381
    %p384 = scmp.ne.s32.totalorder %s369, %s383
    %p385 = scmp.eq.s32.totalorder %s34, 0
    %p386 = por %p384, %p385
    %s388 = sadd.s32 %s387, 1
    %p391 = scmp.eq.s32.totalorder %s28, 1
    %p392 = scmp.ne.s32.totalorder %s387, %s389
    %p393 = scmp.eq.s32.totalorder %s28, 0
    %p394 = por %p392, %p393
    %p395 = scmp.ne.s32.totalorder %s387, %s389
    %p396 = scmp.eq.s32.totalorder %s33, 1
    %p397 = por %p395, %p396
    %p398 = scmp.ne.s32.totalorder %s389, %s390
    %p399 = scmp.eq.s32.totalorder %s33, 0
    %p400 = por %p398, %p399
    %p401 = scmp.ne.s32.totalorder %s389, %s390
    %p402 = scmp.eq.s32.totalorder %s34, 1
    %p403 = por %p401, %p402
    %p405 = scmp.ne.s32.totalorder %s390, %s404
    %p406 = scmp.eq.s32.totalorder %s34, 0
    %p407 = por %p405, %p406
    %s409 = sadd.s32 %s408, 1
    %p412 = scmp.eq.s32.totalorder %s28, 1
    %p413 = scmp.ne.s32.totalorder %s408, %s410
    %p414 = scmp.eq.s32.totalorder %s28, 0
    %p415 = por %p413, %p414
    %p416 = scmp.ne.s32.totalorder %s408, %s410
    %p417 = scmp.eq.s32.totalorder %s33, 1
    %p418 = por %p416, %p417
    %p419 = scmp.ne.s32.totalorder %s410, %s411
    %p420 = scmp.eq.s32.totalorder %s33, 0
    %p421 = por %p419, %p420
    %p422 = scmp.ne.s32.totalorder %s410, %s411
    %p423 = scmp.eq.s32.totalorder %s34, 1
    %p424 = por %p422, %p423
    %p426 = scmp.ne.s32.totalorder %s411, %s425
    %p427 = scmp.eq.s32.totalorder %s34, 0
    %p428 = por %p426, %p427
    %s430 = sadd.s32 %s429, 1
    %p433 = scmp.eq.s32.totalorder %s28, 1
    %p434 = scmp.ne.s32.totalorder %s429, %s431
    %p435 = scmp.eq.s32.totalorder %s28, 0
    %p436 = por %p434, %p435
    %p437 = scmp.ne.s32.totalorder %s429, %s431
    %p438 = scmp.eq.s32.totalorder %s33, 1
    %p439 = por %p437, %p438
    %p440 = scmp.ne.s32.totalorder %s431, %s432
    %p441 = scmp.eq.s32.totalorder %s33, 0
    %p442 = por %p440, %p441
    %p443 = scmp.ne.s32.totalorder %s431, %s432
    %p444 = scmp.eq.s32.totalorder %s34, 1
    %p445 = por %p443, %p444
    %p447 = scmp.ne.s32.totalorder %s432, %s446
    %p448 = scmp.eq.s32.totalorder %s34, 0
    %p449 = por %p447, %p448
    %s451 = sadd.s32 %s450, 1
    %p454 = scmp.eq.s32.totalorder %s28, 1
    %p455 = scmp.ne.s32.totalorder %s450, %s452
    %p456 = scmp.eq.s32.totalorder %s28, 0
    %p457 = por %p455, %p456
    %p458 = scmp.ne.s32.totalorder %s450, %s452
    %p459 = scmp.eq.s32.totalorder %s33, 1
    %p460 = por %p458, %p459
    %p461 = scmp.ne.s32.totalorder %s452, %s453
    %p462 = scmp.eq.s32.totalorder %s33, 0
    %p463 = por %p461, %p462
    %p464 = scmp.ne.s32.totalorder %s452, %s453
    %p465 = scmp.eq.s32.totalorder %s34, 1
    %p466 = por %p464, %p465
    %p468 = scmp.ne.s32.totalorder %s453, %s467
    %p469 = scmp.eq.s32.totalorder %s34, 0
    %p470 = por %p468, %p469
    %s472 = sadd.s32 %s471, 1
    %p475 = scmp.eq.s32.totalorder %s28, 1
    %p476 = scmp.ne.s32.totalorder %s471, %s473
    %p477 = scmp.eq.s32.totalorder %s28, 0
    %p478 = por %p476, %p477
    %p479 = scmp.ne.s32.totalorder %s471, %s473
    %p480 = scmp.eq.s32.totalorder %s33, 1
    %p481 = por %p479, %p480
    %p482 = scmp.ne.s32.totalorder %s473, %s474
    %p483 = scmp.eq.s32.totalorder %s33, 0
    %p484 = por %p482, %p483
    %p485 = scmp.ne.s32.totalorder %s473, %s474
    %p486 = scmp.eq.s32.totalorder %s34, 1
    %p487 = por %p485, %p486
    %p489 = scmp.ne.s32.totalorder %s474, %s488
    %p490 = scmp.eq.s32.totalorder %s34, 0
    %p491 = por %p489, %p490
    %s493 = sadd.s32 %s492, 1
    %p496 = scmp.eq.s32.totalorder %s28, 1
    %p497 = scmp.ne.s32.totalorder %s492, %s494
    %p498 = scmp.eq.s32.totalorder %s28, 0
    %p499 = por %p497, %p498
    %p500 = scmp.ne.s32.totalorder %s492, %s494
    %p501 = scmp.eq.s32.totalorder %s33, 1
    %p502 = por %p500, %p501
    %p503 = scmp.ne.s32.totalorder %s494, %s495
    %p504 = scmp.eq.s32.totalorder %s33, 0
    %p505 = por %p503, %p504
    %p506 = scmp.ne.s32.totalorder %s494, %s495
    %p507 = scmp.eq.s32.totalorder %s34, 1
    %p508 = por %p506, %p507
    %p510 = scmp.ne.s32.totalorder %s495, %s509
    %p511 = scmp.eq.s32.totalorder %s34, 0
    %p512 = por %p510, %p511
    %s513 = ssub.s32 %s28, %s35
    %p514 = scmp.eq.s32.totalorder %s513, 0
    %s516 = sadd.s32 %s515, 1
    %s517 = scalar_select %p514, %s515, %s516
    %p520 = pneg %p514
    %p521 = scmp.eq.s32.totalorder %s28, 1
    %p522 = por %p520, %p521
    %p523 = scmp.ne.s32.totalorder %s515, %s518
    %p524 = scmp.eq.s32.totalorder %s28, 0
    %p525 = por %p523, %p524
    %p526 = scmp.ne.s32.totalorder %s515, %s518
    %p527 = scmp.eq.s32.totalorder %s33, 1
    %p528 = por %p526, %p527
    %p529 = scmp.ne.s32.totalorder %s518, %s519
    %p530 = scmp.eq.s32.totalorder %s33, 0
    %p531 = por %p529, %p530
    %p532 = scmp.ne.s32.totalorder %s518, %s519
    %p533 = scmp.eq.s32.totalorder %s34, 1
    %p534 = por %p532, %p533
    %p536 = scmp.ne.s32.totalorder %s519, %s535
    %p537 = scmp.eq.s32.totalorder %s34, 0
    %p538 = por %p536, %p537
    %p539 = scmp.le.s32.totalorder 1, %s28
    %p540 = scmp.lt.s32.totalorder %s28, 3
    %p541 = pnand %p539, %p540
    %p542 = pneg %p541
    // Predicated region
    $region9: #{bert_mrc_forward.1} parent=5 // pred_check
      _
    $region10: #{bert_mrc_forward.1} parent=5 // pred_check_branch
      %544 = sbr.rel (%p541) target = $region12
    $region11: #{bert_mrc_forward.1} parent=5 // pred_region
      %s545 = ssub.s32 %s28, 1
      // Predicated region
      $region13: #{bert_mrc_forward.1} parent=11 // pred_check
        %p546 = pneg %p127
      $region14: #{bert_mrc_forward.1} parent=11 // pred_check_branch
        %548 = sbr.rel (%p546) target = $region16
      $region15: #{bert_mrc_forward.1} parent=11 // pred_region
        _
      $region16: #{bert_mrc_forward.1} parent=11 // pred_fallthru
        _
      // Predicated region
      $region17: #{bert_mrc_forward.1} parent=11 // pred_check
        %p549 = pneg %p148
      $region18: #{bert_mrc_forward.1} parent=11 // pred_check_branch
        %551 = sbr.rel (%p549) target = $region20
      $region19: #{bert_mrc_forward.1} parent=11 // pred_region
        _
      $region20: #{bert_mrc_forward.1} parent=11 // pred_fallthru
        _
      // Predicated region
      $region21: #{bert_mrc_forward.1} parent=11 // pred_check
        %p552 = pneg %p169
      $region22: #{bert_mrc_forward.1} parent=11 // pred_check_branch
        %554 = sbr.rel (%p552) target = $region24
      $region23: #{bert_mrc_forward.1} parent=11 // pred_region
        _
      $region24: #{bert_mrc_forward.1} parent=11 // pred_fallthru
        _
      // Predicated region
      $region25: #{bert_mrc_forward.1} parent=11 // pred_check
        %p555 = pneg %p190
      $region26: #{bert_mrc_forward.1} parent=11 // pred_check_branch
        %557 = sbr.rel (%p555) target = $region28
      $region27: #{bert_mrc_forward.1} parent=11 // pred_region
        _
      $region28: #{bert_mrc_forward.1} parent=11 // pred_fallthru
        _
      // Predicated region
      $region29: #{bert_mrc_forward.1} parent=11 // pred_check
        %p558 = pneg %p211
      $region30: #{bert_mrc_forward.1} parent=11 // pred_check_branch
        %560 = sbr.rel (%p558) target = $region32
      $region31: #{bert_mrc_forward.1} parent=11 // pred_region
        _
      $region32: #{bert_mrc_forward.1} parent=11 // pred_fallthru
        _
      // Predicated region
      $region33: #{bert_mrc_forward.1} parent=11 // pred_check
        %p561 = pneg %p232
      $region34: #{bert_mrc_forward.1} parent=11 // pred_check_branch
        %563 = sbr.rel (%p561) target = $region36
      $region35: #{bert_mrc_forward.1} parent=11 // pred_region
        _
      $region36: #{bert_mrc_forward.1} parent=11 // pred_fallthru
        _
      // Predicated region
      $region37: #{bert_mrc_forward.1} parent=11 // pred_check
        %p564 = pneg %p253
      $region38: #{bert_mrc_forward.1} parent=11 // pred_check_branch
        %566 = sbr.rel (%p564) target = $region40
      $region39: #{bert_mrc_forward.1} parent=11 // pred_region
        _
      $region40: #{bert_mrc_forward.1} parent=11 // pred_fallthru
        _
      // Predicated region
      $region41: #{bert_mrc_forward.1} parent=11 // pred_check
        %p567 = pneg %p274
      $region42: #{bert_mrc_forward.1} parent=11 // pred_check_branch
        %569 = sbr.rel (%p567) target = $region44
      $region43: #{bert_mrc_forward.1} parent=11 // pred_region
        _
      $region44: #{bert_mrc_forward.1} parent=11 // pred_fallthru
        _
      // Predicated region
      $region45: #{bert_mrc_forward.1} parent=11 // pred_check
        %p570 = pneg %p295
      $region46: #{bert_mrc_forward.1} parent=11 // pred_check_branch
        %572 = sbr.rel (%p570) target = $region48
      $region47: #{bert_mrc_forward.1} parent=11 // pred_region
        _
      $region48: #{bert_mrc_forward.1} parent=11 // pred_fallthru
        _
      // Predicated region
      $region49: #{bert_mrc_forward.1} parent=11 // pred_check
        %p573 = pneg %p316
      $region50: #{bert_mrc_forward.1} parent=11 // pred_check_branch
        %575 = sbr.rel (%p573) target = $region52
      $region51: #{bert_mrc_forward.1} parent=11 // pred_region
        _
      $region52: #{bert_mrc_forward.1} parent=11 // pred_fallthru
        _
      // Predicated region
      $region53: #{bert_mrc_forward.1} parent=11 // pred_check
        %p576 = pneg %p337
      $region54: #{bert_mrc_forward.1} parent=11 // pred_check_branch
        %578 = sbr.rel (%p576) target = $region56
      $region55: #{bert_mrc_forward.1} parent=11 // pred_region
        _
      $region56: #{bert_mrc_forward.1} parent=11 // pred_fallthru
        _
      // Predicated region
      $region57: #{bert_mrc_forward.1} parent=11 // pred_check
        %p579 = pneg %p358
      $region58: #{bert_mrc_forward.1} parent=11 // pred_check_branch
        %581 = sbr.rel (%p579) target = $region60
      $region59: #{bert_mrc_forward.1} parent=11 // pred_region
        _
      $region60: #{bert_mrc_forward.1} parent=11 // pred_fallthru
        _
      // Predicated region
      $region61: #{bert_mrc_forward.1} parent=11 // pred_check
        %p582 = pneg %p379
      $region62: #{bert_mrc_forward.1} parent=11 // pred_check_branch
        %584 = sbr.rel (%p582) target = $region64
      $region63: #{bert_mrc_forward.1} parent=11 // pred_region
        _
      $region64: #{bert_mrc_forward.1} parent=11 // pred_fallthru
        _
      // Predicated region
      $region65: #{bert_mrc_forward.1} parent=11 // pred_check
        %p585 = pneg %p400
      $region66: #{bert_mrc_forward.1} parent=11 // pred_check_branch
        %587 = sbr.rel (%p585) target = $region68
      $region67: #{bert_mrc_forward.1} parent=11 // pred_region
        _
      $region68: #{bert_mrc_forward.1} parent=11 // pred_fallthru
        _
      // Predicated region
      $region69: #{bert_mrc_forward.1} parent=11 // pred_check
        %p588 = pneg %p421
      $region70: #{bert_mrc_forward.1} parent=11 // pred_check_branch
        %590 = sbr.rel (%p588) target = $region72
      $region71: #{bert_mrc_forward.1} parent=11 // pred_region
        _
      $region72: #{bert_mrc_forward.1} parent=11 // pred_fallthru
        _
      // Predicated region
      $region73: #{bert_mrc_forward.1} parent=11 // pred_check
        %p591 = pneg %p442
      $region74: #{bert_mrc_forward.1} parent=11 // pred_check_branch
        %593 = sbr.rel (%p591) target = $region76
      $region75: #{bert_mrc_forward.1} parent=11 // pred_region
        _
      $region76: #{bert_mrc_forward.1} parent=11 // pred_fallthru
        _
      // Predicated region
      $region77: #{bert_mrc_forward.1} parent=11 // pred_check
        %p594 = pneg %p463
      $region78: #{bert_mrc_forward.1} parent=11 // pred_check_branch
        %596 = sbr.rel (%p594) target = $region80
      $region79: #{bert_mrc_forward.1} parent=11 // pred_region
        _
      $region80: #{bert_mrc_forward.1} parent=11 // pred_fallthru
        _
      // Predicated region
      $region81: #{bert_mrc_forward.1} parent=11 // pred_check
        %p597 = pneg %p484
      $region82: #{bert_mrc_forward.1} parent=11 // pred_check_branch
        %599 = sbr.rel (%p597) target = $region84
      $region83: #{bert_mrc_forward.1} parent=11 // pred_region
        _
      $region84: #{bert_mrc_forward.1} parent=11 // pred_fallthru
        _
      // Predicated region
      $region85: #{bert_mrc_forward.1} parent=11 // pred_check
        %p600 = pneg %p505
      $region86: #{bert_mrc_forward.1} parent=11 // pred_check_branch
        %602 = sbr.rel (%p600) target = $region88
      $region87: #{bert_mrc_forward.1} parent=11 // pred_region
        _
      $region88: #{bert_mrc_forward.1} parent=11 // pred_fallthru
        _
    $region12: #{bert_mrc_forward.1} parent=5 // pred_fallthru
      _
    %p603 = scmp.lt.s32.totalorder %s28, 2
    // Predicated region
    $region89: #{bert_mrc_forward.1} parent=5 // pred_check
      %p604 = pneg %p603
    $region90: #{bert_mrc_forward.1} parent=5 // pred_check_branch
      %606 = sbr.rel (%p604) target = $region92
    $region91: #{bert_mrc_forward.1} parent=5 // pred_region
      // Predicated region
      $region93: #{bert_mrc_forward.1} parent=91 // pred_check
        %p607 = pneg %p48
      $region94: #{bert_mrc_forward.1} parent=91 // pred_check_branch
        %609 = sbr.rel (%p607) target = $region96
      $region95: #{bert_mrc_forward.1} parent=91 // pred_region
        %p610 = scmp.lt.s32.totalorder %s28, 1
        %s611 = scalar_select %p610, %s28, 1
        %s612 = smul.addr %s611, 8
        %s613 = scalar_lea.vmem %s0, %s612
      $region96: #{bert_mrc_forward.1} parent=91 // pred_fallthru
        _
      // Predicated region
      $region97: #{bert_mrc_forward.1} parent=91 // pred_check
        %p614 = pneg %p74
      $region98: #{bert_mrc_forward.1} parent=91 // pred_check_branch
        %616 = sbr.rel (%p614) target = $region100
      $region99: #{bert_mrc_forward.1} parent=91 // pred_region
        %p617 = scmp.lt.s32.totalorder %s28, 1
        %s618 = scalar_select %p617, %s28, 1
        %s619 = smul.addr %s618, 8
        %s620 = scalar_lea.vmem %s1, %s619
      $region100: #{bert_mrc_forward.1} parent=91 // pred_fallthru
        _
      // Predicated region
      $region101: #{bert_mrc_forward.1} parent=91 // pred_check
        %p621 = pneg %p100
      $region102: #{bert_mrc_forward.1} parent=91 // pred_check_branch
        %623 = sbr.rel (%p621) target = $region104
      $region103: #{bert_mrc_forward.1} parent=91 // pred_region
        %p624 = scmp.lt.s32.totalorder %s28, 1
        %s625 = scalar_select %p624, %s28, 1
        %s626 = scalar_lea.vmem %s2, %s625
      $region104: #{bert_mrc_forward.1} parent=91 // pred_fallthru
        _
    $region92: #{bert_mrc_forward.1} parent=5 // pred_fallthru
      _
    %p627 = scmp.le.s32.totalorder 1, %s28
    %p628 = scmp.lt.s32.totalorder %s28, 3
    %p629 = pnand %p627, %p628
    %p630 = pneg %p629
    // Predicated region
    $region105: #{bert_mrc_forward.1} parent=5 // pred_check
      _
    $region106: #{bert_mrc_forward.1} parent=5 // pred_check_branch
      %632 = sbr.rel (%p629) target = $region108
    $region107: #{bert_mrc_forward.1} parent=5 // pred_region
      %s633 = ssub.s32 %s28, 1
      %p634 = scmp.lt.s32.totalorder %s33, 1
      %s635 = scalar_select %p634, %s33, 1
      %s636 = smul.addr %s635, 8
      %s637 = scalar_lea.vmem %s0, %s636
      %p638 = pneg %p54
      %p639 = pneg %p51
      %p640 = scmp.lt.s32.totalorder %s33, 1
      %s641 = scalar_select %p640, %s33, 1
      %s642 = smul.addr %s641, 8
      %s643 = scalar_lea.vmem %s1, %s642
      %p644 = pneg %p80
      %p645 = pneg %p77
      %p646 = scmp.lt.s32.totalorder %s33, 1
      %s647 = scalar_select %p646, %s33, 1
      %s648 = scalar_lea.vmem %s2, %s647
      %p649 = pneg %p106
      %p650 = pneg %p103
      %p651 = pneg %p127
      %p652 = pneg %p124
      %p653 = pneg %p148
      %p654 = pneg %p145
      %p655 = pneg %p169
      %p656 = pneg %p166
      %p657 = pneg %p190
      %p658 = pneg %p187
      %p659 = pneg %p211
      %p660 = pneg %p208
      %p661 = pneg %p232
      %p662 = pneg %p229
      %p663 = pneg %p253
      %p664 = pneg %p250
      %p665 = pneg %p274
      %p666 = pneg %p271
      %p667 = pneg %p295
      %p668 = pneg %p292
      %p669 = pneg %p316
      %p670 = pneg %p313
      %p671 = pneg %p337
      %p672 = pneg %p334
      %p673 = pneg %p358
      %p674 = pneg %p355
      %p675 = pneg %p379
      %p676 = pneg %p376
      %p677 = pneg %p400
      %p678 = pneg %p397
      %p679 = pneg %p421
      %p680 = pneg %p418
      %p681 = pneg %p442
      %p682 = pneg %p439
      %p683 = pneg %p463
      %p684 = pneg %p460
      %p685 = pneg %p484
      %p686 = pneg %p481
      %p687 = pneg %p505
      %p688 = pneg %p502
      %p689 = pneg %p531
      %p690 = pneg %p528
      %p691 = scmp.lt.s32.totalorder %s33, 1
      %s692 = scalar_select %p691, %s33, 1
      %s693 = smul.addr %s692, 8
      %s694 = scalar_lea.vmem %s22, %s693
      %p695 = scmp.lt.s32.totalorder %s33, 1
      %s696 = scalar_select %p695, %s33, 1
      %s697 = smul.addr %s696, 8
      %s698 = scalar_lea.vmem %s0, %s697
      %p699 = scmp.lt.s32.totalorder %s33, 1
      %s700 = scalar_select %p699, %s33, 1
      %s701 = smul.addr %s700, 8
      %s702 = scalar_lea.vmem %s1, %s701
      %p703 = scmp.lt.s32.totalorder %s33, 1
      %s704 = scalar_select %p703, %s33, 1
      %s705 = scalar_lea.vmem %s2, %s704
      %p706 = scmp.lt.s32.totalorder %s33, 1
      %s707 = scalar_select %p706, %s33, 1
      %s708 = smul.addr %s707, 8
      %s709 = scalar_lea.vmem %s22, %s708
      %v710 = vld [vmem:[%s698] sm:$0xff]
      %v711 = vld [vmem:[%s702] sm:$0xff]
      %v712 = vlaneseq
      %v713 = vand.u32 %v712, 127
      %714 = vset.pattern.permute.xlu0 0
      %715 = vperm.xlu0 %714, %v710
      %v716 = vpop.permute.xlu0 %715
      %vm717 = vcmp.eq.s32.totalorder %v713, %v716
      %v718 = vsel %vm717, 1, 0
      %v719 = vcvt.s32.f32 %v718
      %720 = vset.pattern.permute.xlu0 0
      %721 = vperm.xlu0 %720, %v711
      %v722 = vpop.permute.xlu0 %721
      %vm723 = vcmp.eq.s32.totalorder %v713, %v722
      %v724 = vsel %vm723, 1, 0
      %v725 = vcvt.s32.f32 %v724
      %v726 = vld [vmem:[%s3] sm:$0xff]
      %v727 = vld [vmem:[%s3 + $0x8] sm:$0xff]
      %v728 = vld [vmem:[%s3 + $0x10] sm:$0xff]
      %v729 = vld [vmem:[%s3 + $0x18] sm:$0xff]
      %v730 = vld [vmem:[%s3 + $0x20] sm:$0xff]
      %v731 = vld [vmem:[%s3 + $0x28] sm:$0xff]
      %v732 = vld [vmem:[%s3 + $0x30] sm:$0xff]
      %v733 = vld [vmem:[%s3 + $0x38] sm:$0xff]
      %v734 = vld [vmem:[%s3 + $0x40] sm:$0xff]
      %v735 = vld [vmem:[%s3 + $0x48] sm:$0xff]
      %v736 = vld [vmem:[%s3 + $0x50] sm:$0xff]
      %v737 = vld [vmem:[%s3 + $0x58] sm:$0xff]
      %v738 = vld [vmem:[%s3 + $0x60] sm:$0xf]
      %v739 = vld [vmem:[%s4] sm:$0xff]
      %vm740 = vcmask 818176
      %v742 = vsel %vm740, %v719, 0
      %vm744 = vcmask 1043456
      %v746 = vsel %vm744, %v738, 0
      %748 = vmatpush.msra.mxu0 0.0
      %749 = vmatpush.msra.mxu0 0.0
      %750 = vmatpush.msra.mxu0 0.0
      %751 = vmatpush.msra.mxu0 %v746
      %752 = vmatpush.msra.mxu0 %v737
      %753 = vmatpush.msra.mxu0 %v736
      %754 = vmatpush.msra.mxu0 %v735
      %755 = vmatpush.msra.mxu0 %v734
      %756 = vmatpush.msra.mxu0 %v733
      %757 = vmatpush.msra.mxu0 %v732
      %758 = vmatpush.msra.mxu0 %v731
      %759 = vmatpush.msra.mxu0 %v730
      %760 = vmatpush.msra.mxu0 %v729
      %761 = vmatpush.msra.mxu0 %v728
      %762 = vmatpush.msra.mxu0 %v727
      %763 = vmatpush.msra.mxu0 %v726
      %764 = vmatmul.f32.gmra.mxu0 %v742
      %v765 = vpop.f32.mrf.mxu0
      %v766 = vadd.f32 %v739, %v765
      %767 = vdwg.mxu0
      %v768 = vld [vmem:[%s5] sm:$0x3]
      %vm769 = vcmask 15360
      %v771 = vsel %vm769, %v725, 0
      %vm773 = vcmask 1041408
      %v775 = vsel %vm773, %v768, 0
      %777 = vmatpush.msra.mxu0 0.0
      %778 = vmatpush.msra.mxu0 0.0
      %779 = vmatpush.msra.mxu0 0.0
      %780 = vmatpush.msra.mxu0 0.0
      %781 = vmatpush.msra.mxu0 0.0
      %782 = vmatpush.msra.mxu0 0.0
      %783 = vmatpush.msra.mxu0 0.0
      %784 = vmatpush.msra.mxu0 0.0
      %785 = vmatpush.msra.mxu0 0.0
      %786 = vmatpush.msra.mxu0 0.0
      %787 = vmatpush.msra.mxu0 0.0
      %788 = vmatpush.msra.mxu0 0.0
      %789 = vmatpush.msra.mxu0 0.0
      %790 = vmatpush.msra.mxu0 0.0
      %791 = vmatpush.msra.mxu0 0.0
      %792 = vmatpush.msra.mxu0 %v775
      %793 = vmatmul.f32.gmra.mxu0 %v771
      %v794 = vpop.f32.mrf.mxu0
      %v795 = vadd.f32 0.0, %v794
      %796 = vdwg.mxu0
      %v797 = vadd.f32 %v766, %v795
      %v798 = vld [vmem:[%s6] sm:$0x1]
      %v799 = vld [vmem:[%s7] sm:$0x1]
      %vm800 = vcmask 261120
      %v801 = vsel %vm800, %v797, 0.0
      %802 = vadd.xlane.f32.xlu0 %v801
      %v803 = vpop.xlane.xlu0 %802
      %v804 = vrcp.pop 32.0
      %v805 = vmul.f32 32.0, %v804
      %v806 = vsub.f32 1.0, %v805
      %v807 = vmul.f32 %v804, %v806
      %v808 = vadd.f32 %v804, %v807
      %vm809 = vweird.f32 %v804
      %v810 = vsel %vm809, %v804, %v808
      %v811 = vmul.f32 %v803, %v810
      %v812 = vsub.f32 %v797, %v811
      %v813 = vmul.f32 %v812, %v812
      %v814 = vsel %vm800, %v813, 0.0
      %815 = vadd.xlane.f32.xlu0 %v814
      %v816 = vpop.xlane.xlu0 %815
      %v817 = vmul.f32 %v816, %v810
      %v818 = vadd.f32 %v817, 1e-12
      %v819 = vrsqrt.pop %v818
      %v820 = vmul.f32 %v819, %v818
      %v821 = vmul.f32 %v820, %v819
      %v822 = vmul.f32 0.5, %v821
      %v823 = vsub.f32 1.5, %v822
      %v824 = vmul.f32 %v819, %v823
      %vm825 = vweird.f32 %v818
      %vm826 = vweird.f32 %v819
      %vm827 = vmor %vm825, %vm826
      %v828 = vsel %vm827, %v819, %v824
      %v829 = vmul.f32 %v812, %v828
      %v831 = vperm.slane %v798, 0
      %v833 = vmul.f32 %v829, %v831
      %v835 = vperm.slane %v799, 0
      %v837 = vadd.f32 %v833, %v835
      %v838 = vld [vmem:[%s705] sm:$0x1]
      %v839 = vsub.f32 1.0, %v838
      %v840 = vmul.f32 %v839, -1e+09
      %v841 = vld [vmem:[%s8] sm:$0xff]
      %v842 = vld [vmem:[%s8 + $0x8] sm:$0xff]
      %v843 = vld [vmem:[%s8 + $0x10] sm:$0xff]
      %v844 = vld [vmem:[%s8 + $0x18] sm:$0xff]
      %v845 = vld [vmem:[%s9] sm:$0x1]
      %v847 = vperm.slane %v845, 0
      %v850 = vsel %vm800, %v837, 0
      %852 = vmatpush.msra.mxu0 0.0
      %853 = vmatpush.msra.mxu0 0.0
      %854 = vmatpush.msra.mxu0 0.0
      %855 = vmatpush.msra.mxu0 0.0
      %856 = vmatpush.msra.mxu0 0.0
      %857 = vmatpush.msra.mxu0 0.0
      %858 = vmatpush.msra.mxu0 0.0
      %859 = vmatpush.msra.mxu0 0.0
      %860 = vmatpush.msra.mxu0 0.0
      %861 = vmatpush.msra.mxu0 0.0
      %862 = vmatpush.msra.mxu0 0.0
      %863 = vmatpush.msra.mxu0 0.0
      %864 = vmatpush.msra.mxu0 %v844
      %865 = vmatpush.msra.mxu0 %v843
      %866 = vmatpush.msra.mxu0 %v842
      %867 = vmatpush.msra.mxu0 %v841
      %868 = vmatmul.f32.gmra.mxu0 %v850
      %v869 = vpop.f32.mrf.mxu0
      %v870 = vadd.f32 %v847, %v869
      %871 = vdwg.mxu0
      %873 = vrot.lane.b32.xlu0 %v870, 120
      %v874 = vpop.permute.xlu0 %873
      %875 = vrot.lane.b32.xlu0 %v870, 112
      %v876 = vpop.permute.xlu0 %875
      %877 = vrot.lane.b32.xlu0 %v870, 104
      %v878 = vpop.permute.xlu0 %877
      %879 = vrot.lane.b32.xlu0 %v870, 96
      %v880 = vpop.permute.xlu0 %879
      %vm881 = vcmask 64512
      %v882 = vsel %vm881, %v870, 0
      %v884 = vsel %vm881, %v880, 0
      %886 = vmatpush.xpose.msra.mxu0 0.0
      %887 = vmatpush.xpose.msra.mxu0 0.0
      %888 = vmatpush.xpose.msra.mxu0 0.0
      %889 = vmatpush.xpose.msra.mxu0 0.0
      %890 = vmatpush.xpose.msra.mxu0 0.0
      %891 = vmatpush.xpose.msra.mxu0 0.0
      %892 = vmatpush.xpose.msra.mxu0 0.0
      %893 = vmatpush.xpose.msra.mxu0 0.0
      %894 = vmatpush.xpose.msra.mxu0 0.0
      %895 = vmatpush.xpose.msra.mxu0 0.0
      %896 = vmatpush.xpose.msra.mxu0 0.0
      %897 = vmatpush.xpose.msra.mxu0 0.0
      %898 = vmatpush.xpose.msra.mxu0 0.0
      %899 = vmatpush.xpose.msra.mxu0 0.0
      %900 = vmatpush.xpose.msra.mxu0 0.0
      %901 = vmatpush.xpose.msra.mxu0 %v884
      %902 = vmatmul.f32.gmra.mxu0 %v882
      %v903 = vpop.f32.mrf.mxu0
      %v904 = vadd.f32 0.0, %v903
      %905 = vdwg.mxu0
      %906 = vrot.lane.b32.xlu0 %v874, 96
      %v907 = vpop.permute.xlu0 %906
      %v908 = vsel %vm881, %v874, 0
      %v910 = vsel %vm881, %v907, 0
      %912 = vmatpush.xpose.msra.mxu0 0.0
      %913 = vmatpush.xpose.msra.mxu0 0.0
      %914 = vmatpush.xpose.msra.mxu0 0.0
      %915 = vmatpush.xpose.msra.mxu0 0.0
      %916 = vmatpush.xpose.msra.mxu0 0.0
      %917 = vmatpush.xpose.msra.mxu0 0.0
      %918 = vmatpush.xpose.msra.mxu0 0.0
      %919 = vmatpush.xpose.msra.mxu0 0.0
      %920 = vmatpush.xpose.msra.mxu0 0.0
      %921 = vmatpush.xpose.msra.mxu0 0.0
      %922 = vmatpush.xpose.msra.mxu0 0.0
      %923 = vmatpush.xpose.msra.mxu0 0.0
      %924 = vmatpush.xpose.msra.mxu0 0.0
      %925 = vmatpush.xpose.msra.mxu0 0.0
      %926 = vmatpush.xpose.msra.mxu0 0.0
      %927 = vmatpush.xpose.msra.mxu0 %v910
      %928 = vmatmul.f32.gmra.mxu0 %v908
      %v929 = vpop.f32.mrf.mxu0
      %v930 = vadd.f32 0.0, %v929
      %931 = vdwg.mxu0
      %932 = vrot.lane.b32.xlu0 %v876, 96
      %v933 = vpop.permute.xlu0 %932
      %v934 = vsel %vm881, %v876, 0
      %v936 = vsel %vm881, %v933, 0
      %938 = vmatpush.xpose.msra.mxu0 0.0
      %939 = vmatpush.xpose.msra.mxu0 0.0
      %940 = vmatpush.xpose.msra.mxu0 0.0
      %941 = vmatpush.xpose.msra.mxu0 0.0
      %942 = vmatpush.xpose.msra.mxu0 0.0
      %943 = vmatpush.xpose.msra.mxu0 0.0
      %944 = vmatpush.xpose.msra.mxu0 0.0
      %945 = vmatpush.xpose.msra.mxu0 0.0
      %946 = vmatpush.xpose.msra.mxu0 0.0
      %947 = vmatpush.xpose.msra.mxu0 0.0
      %948 = vmatpush.xpose.msra.mxu0 0.0
      %949 = vmatpush.xpose.msra.mxu0 0.0
      %950 = vmatpush.xpose.msra.mxu0 0.0
      %951 = vmatpush.xpose.msra.mxu0 0.0
      %952 = vmatpush.xpose.msra.mxu0 0.0
      %953 = vmatpush.xpose.msra.mxu0 %v936
      %954 = vmatmul.f32.gmra.mxu0 %v934
      %v955 = vpop.f32.mrf.mxu0
      %v956 = vadd.f32 0.0, %v955
      %957 = vdwg.mxu0
      %958 = vrot.lane.b32.xlu0 %v878, 96
      %v959 = vpop.permute.xlu0 %958
      %v960 = vsel %vm881, %v878, 0
      %v962 = vsel %vm881, %v959, 0
      %964 = vmatpush.xpose.msra.mxu0 0.0
      %965 = vmatpush.xpose.msra.mxu0 0.0
      %966 = vmatpush.xpose.msra.mxu0 0.0
      %967 = vmatpush.xpose.msra.mxu0 0.0
      %968 = vmatpush.xpose.msra.mxu0 0.0
      %969 = vmatpush.xpose.msra.mxu0 0.0
      %970 = vmatpush.xpose.msra.mxu0 0.0
      %971 = vmatpush.xpose.msra.mxu0 0.0
      %972 = vmatpush.xpose.msra.mxu0 0.0
      %973 = vmatpush.xpose.msra.mxu0 0.0
      %974 = vmatpush.xpose.msra.mxu0 0.0
      %975 = vmatpush.xpose.msra.mxu0 0.0
      %976 = vmatpush.xpose.msra.mxu0 0.0
      %977 = vmatpush.xpose.msra.mxu0 0.0
      %978 = vmatpush.xpose.msra.mxu0 0.0
      %979 = vmatpush.xpose.msra.mxu0 %v962
      %980 = vmatmul.f32.gmra.mxu0 %v960
      %v981 = vpop.f32.mrf.mxu0
      %v982 = vadd.f32 0.0, %v981
      %983 = vdwg.mxu0
      %v984 = vmul.f32 %v904, 0.35355338
      %v985 = vmul.f32 %v930, 0.35355338
      %v986 = vmul.f32 %v956, 0.35355338
      %v987 = vmul.f32 %v982, 0.35355338
      %v989 = vperm.slane %v840, 0
      %v991 = vadd.f32 %v984, %v989
      %v992 = vadd.f32 %v985, %v989
      %v993 = vadd.f32 %v986, %v989
      %v994 = vadd.f32 %v987, %v989
      %v995 = vsel %vm881, %v991, -inf
      %996 = vmax.xlane.f32.xlu0 %v995
      %v997 = vpop.xlane.xlu0 %996
      %v998 = vsel %vm881, %v992, -inf
      %999 = vmax.xlane.f32.xlu0 %v998
      %v1000 = vpop.xlane.xlu0 %999
      %v1001 = vsel %vm881, %v993, -inf
      %1002 = vmax.xlane.f32.xlu0 %v1001
      %v1003 = vpop.xlane.xlu0 %1002
      %v1004 = vsel %vm881, %v994, -inf
      %1005 = vmax.xlane.f32.xlu0 %v1004
      %v1006 = vpop.xlane.xlu0 %1005
      %v1007 = vsub.f32 %v991, %v997
      %v1008 = vsub.f32 %v992, %v1000
      %v1009 = vsub.f32 %v993, %v1003
      %v1010 = vsub.f32 %v994, %v1006
      %v1011 = vmul.f32 %v1007, 1.442695
      %v1012 = vpow.pop %v1011
      %v1013 = vmul.f32 %v1008, 1.442695
      %v1014 = vpow.pop %v1013
      %v1015 = vmul.f32 %v1009, 1.442695
      %v1016 = vpow.pop %v1015
      %v1017 = vmul.f32 %v1010, 1.442695
      %v1018 = vpow.pop %v1017
      %v1019 = vsel %vm881, %v1012, 0.0
      %1020 = vadd.xlane.f32.xlu0 %v1019
      %v1021 = vpop.xlane.xlu0 %1020
      %v1022 = vsel %vm881, %v1014, 0.0
      %1023 = vadd.xlane.f32.xlu0 %v1022
      %v1024 = vpop.xlane.xlu0 %1023
      %v1025 = vsel %vm881, %v1016, 0.0
      %1026 = vadd.xlane.f32.xlu0 %v1025
      %v1027 = vpop.xlane.xlu0 %1026
      %v1028 = vsel %vm881, %v1018, 0.0
      %1029 = vadd.xlane.f32.xlu0 %v1028
      %v1030 = vpop.xlane.xlu0 %1029
      %v1031 = vrcp.pop %v1021
      %v1032 = vmul.f32 %v1021, %v1031
      %v1033 = vsub.f32 1.0, %v1032
      %v1034 = vmul.f32 %v1031, %v1033
      %v1035 = vadd.f32 %v1031, %v1034
      %vm1036 = vweird.f32 %v1021
      %vm1037 = vweird.f32 %v1031
      %vm1038 = vmor %vm1036, %vm1037
      %v1039 = vsel %vm1038, %v1031, %v1035
      %v1040 = vand.u32 2147483647, %v1021
      %vm1041 = vcmp.eq.f32.partialorder %v1040, 8.507059e+37
      %v1042 = vand.u32 %v1021, 2147483648
      %v1043 = vor.u32 1.1754944e-38, %v1042
      %v1044 = vsel %vm1041, %v1043, %v1039
      %v1045 = vmul.f32 %v1012, %v1044
      %v1046 = vrcp.pop %v1024
      %v1047 = vmul.f32 %v1024, %v1046
      %v1048 = vsub.f32 1.0, %v1047
      %v1049 = vmul.f32 %v1046, %v1048
      %v1050 = vadd.f32 %v1046, %v1049
      %vm1051 = vweird.f32 %v1024
      %vm1052 = vweird.f32 %v1046
      %vm1053 = vmor %vm1051, %vm1052
      %v1054 = vsel %vm1053, %v1046, %v1050
      %v1055 = vand.u32 2147483647, %v1024
      %vm1056 = vcmp.eq.f32.partialorder %v1055, 8.507059e+37
      %v1057 = vand.u32 %v1024, 2147483648
      %v1058 = vor.u32 1.1754944e-38, %v1057
      %v1059 = vsel %vm1056, %v1058, %v1054
      %v1060 = vmul.f32 %v1014, %v1059
      %v1061 = vrcp.pop %v1027
      %v1062 = vmul.f32 %v1027, %v1061
      %v1063 = vsub.f32 1.0, %v1062
      %v1064 = vmul.f32 %v1061, %v1063
      %v1065 = vadd.f32 %v1061, %v1064
      %vm1066 = vweird.f32 %v1027
      %vm1067 = vweird.f32 %v1061
      %vm1068 = vmor %vm1066, %vm1067
      %v1069 = vsel %vm1068, %v1061, %v1065
      %v1070 = vand.u32 2147483647, %v1027
      %vm1071 = vcmp.eq.f32.partialorder %v1070, 8.507059e+37
      %v1072 = vand.u32 %v1027, 2147483648
      %v1073 = vor.u32 1.1754944e-38, %v1072
      %v1074 = vsel %vm1071, %v1073, %v1069
      %v1075 = vmul.f32 %v1016, %v1074
      %v1076 = vrcp.pop %v1030
      %v1077 = vmul.f32 %v1030, %v1076
      %v1078 = vsub.f32 1.0, %v1077
      %v1079 = vmul.f32 %v1076, %v1078
      %v1080 = vadd.f32 %v1076, %v1079
      %vm1081 = vweird.f32 %v1030
      %vm1082 = vweird.f32 %v1076
      %vm1083 = vmor %vm1081, %vm1082
      %v1084 = vsel %vm1083, %v1076, %v1080
      %v1085 = vand.u32 2147483647, %v1030
      %vm1086 = vcmp.eq.f32.partialorder %v1085, 8.507059e+37
      %v1087 = vand.u32 %v1030, 2147483648
      %v1088 = vor.u32 1.1754944e-38, %v1087
      %v1089 = vsel %vm1086, %v1088, %v1084
      %v1090 = vmul.f32 %v1018, %v1089
      %1091 = vrot.lane.b32.xlu0 %v870, 64
      %v1092 = vpop.permute.xlu0 %1091
      %v1095 = vsel %vm881, %v1045, 0
      %1097 = vmatpush.msra.mxu0 0.0
      %1098 = vmatpush.msra.mxu0 0.0
      %1099 = vmatpush.msra.mxu0 0.0
      %1100 = vmatpush.msra.mxu0 0.0
      %1101 = vmatpush.msra.mxu0 0.0
      %1102 = vmatpush.msra.mxu0 0.0
      %1103 = vmatpush.msra.mxu0 0.0
      %1104 = vmatpush.msra.mxu0 0.0
      %1105 = vmatpush.msra.mxu0 0.0
      %1106 = vmatpush.msra.mxu0 0.0
      %1107 = vmatpush.msra.mxu0 0.0
      %1108 = vmatpush.msra.mxu0 0.0
      %1109 = vmatpush.msra.mxu0 0.0
      %1110 = vmatpush.msra.mxu0 0.0
      %1111 = vmatpush.msra.mxu0 0.0
      %1112 = vmatpush.msra.mxu0 %v1092
      %1113 = vmatmul.f32.gmra.mxu0 %v1095
      %v1114 = vpop.f32.mrf.mxu0
      %v1115 = vadd.f32 0.0, %v1114
      %1116 = vdwg.mxu0
      %1117 = vrot.lane.b32.xlu0 %v874, 64
      %v1118 = vpop.permute.xlu0 %1117
      %v1121 = vsel %vm881, %v1060, 0
      %1123 = vmatpush.msra.mxu0 0.0
      %1124 = vmatpush.msra.mxu0 0.0
      %1125 = vmatpush.msra.mxu0 0.0
      %1126 = vmatpush.msra.mxu0 0.0
      %1127 = vmatpush.msra.mxu0 0.0
      %1128 = vmatpush.msra.mxu0 0.0
      %1129 = vmatpush.msra.mxu0 0.0
      %1130 = vmatpush.msra.mxu0 0.0
      %1131 = vmatpush.msra.mxu0 0.0
      %1132 = vmatpush.msra.mxu0 0.0
      %1133 = vmatpush.msra.mxu0 0.0
      %1134 = vmatpush.msra.mxu0 0.0
      %1135 = vmatpush.msra.mxu0 0.0
      %1136 = vmatpush.msra.mxu0 0.0
      %1137 = vmatpush.msra.mxu0 0.0
      %1138 = vmatpush.msra.mxu0 %v1118
      %1139 = vmatmul.f32.gmra.mxu0 %v1121
      %v1140 = vpop.f32.mrf.mxu0
      %v1141 = vadd.f32 0.0, %v1140
      %1142 = vdwg.mxu0
      %1143 = vrot.lane.b32.xlu0 %v876, 64
      %v1144 = vpop.permute.xlu0 %1143
      %v1147 = vsel %vm881, %v1075, 0
      %1149 = vmatpush.msra.mxu0 0.0
      %1150 = vmatpush.msra.mxu0 0.0
      %1151 = vmatpush.msra.mxu0 0.0
      %1152 = vmatpush.msra.mxu0 0.0
      %1153 = vmatpush.msra.mxu0 0.0
      %1154 = vmatpush.msra.mxu0 0.0
      %1155 = vmatpush.msra.mxu0 0.0
      %1156 = vmatpush.msra.mxu0 0.0
      %1157 = vmatpush.msra.mxu0 0.0
      %1158 = vmatpush.msra.mxu0 0.0
      %1159 = vmatpush.msra.mxu0 0.0
      %1160 = vmatpush.msra.mxu0 0.0
      %1161 = vmatpush.msra.mxu0 0.0
      %1162 = vmatpush.msra.mxu0 0.0
      %1163 = vmatpush.msra.mxu0 0.0
      %1164 = vmatpush.msra.mxu0 %v1144
      %1165 = vmatmul.f32.gmra.mxu0 %v1147
      %v1166 = vpop.f32.mrf.mxu0
      %v1167 = vadd.f32 0.0, %v1166
      %1168 = vdwg.mxu0
      %1169 = vrot.lane.b32.xlu0 %v878, 64
      %v1170 = vpop.permute.xlu0 %1169
      %v1173 = vsel %vm881, %v1090, 0
      %1175 = vmatpush.msra.mxu0 0.0
      %1176 = vmatpush.msra.mxu0 0.0
      %1177 = vmatpush.msra.mxu0 0.0
      %1178 = vmatpush.msra.mxu0 0.0
      %1179 = vmatpush.msra.mxu0 0.0
      %1180 = vmatpush.msra.mxu0 0.0
      %1181 = vmatpush.msra.mxu0 0.0
      %1182 = vmatpush.msra.mxu0 0.0
      %1183 = vmatpush.msra.mxu0 0.0
      %1184 = vmatpush.msra.mxu0 0.0
      %1185 = vmatpush.msra.mxu0 0.0
      %1186 = vmatpush.msra.mxu0 0.0
      %1187 = vmatpush.msra.mxu0 0.0
      %1188 = vmatpush.msra.mxu0 0.0
      %1189 = vmatpush.msra.mxu0 0.0
      %1190 = vmatpush.msra.mxu0 %v1170
      %1191 = vmatmul.f32.gmra.mxu0 %v1173
      %v1192 = vpop.f32.mrf.mxu0
      %v1193 = vadd.f32 0.0, %v1192
      %1194 = vdwg.mxu0
      %v1195 = vld [vmem:[%s10] sm:$0xff]
      %v1196 = vld [vmem:[%s10 + $0x8] sm:$0xff]
      %v1197 = vld [vmem:[%s10 + $0x10] sm:$0xff]
      %v1198 = vld [vmem:[%s10 + $0x18] sm:$0xff]
      %v1200 = vsel %vm881, %v1115, 0
      %1202 = vmatpush.msra.mxu0 0.0
      %1203 = vmatpush.msra.mxu0 0.0
      %1204 = vmatpush.msra.mxu0 0.0
      %1205 = vmatpush.msra.mxu0 0.0
      %1206 = vmatpush.msra.mxu0 0.0
      %1207 = vmatpush.msra.mxu0 0.0
      %1208 = vmatpush.msra.mxu0 0.0
      %1209 = vmatpush.msra.mxu0 0.0
      %1210 = vmatpush.msra.mxu0 0.0
      %1211 = vmatpush.msra.mxu0 0.0
      %1212 = vmatpush.msra.mxu0 0.0
      %1213 = vmatpush.msra.mxu0 0.0
      %1214 = vmatpush.msra.mxu0 0.0
      %1215 = vmatpush.msra.mxu0 0.0
      %1216 = vmatpush.msra.mxu0 0.0
      %1217 = vmatpush.msra.mxu0 %v1195
      %1218 = vmatmul.f32.gmra.mxu0 %v1200
      %v1219 = vpop.f32.mrf.mxu0
      %v1220 = vadd.f32 0.0, %v1219
      %1221 = vdwg.mxu0
      %v1223 = vsel %vm881, %v1141, 0
      %1225 = vmatpush.msra.mxu0 0.0
      %1226 = vmatpush.msra.mxu0 0.0
      %1227 = vmatpush.msra.mxu0 0.0
      %1228 = vmatpush.msra.mxu0 0.0
      %1229 = vmatpush.msra.mxu0 0.0
      %1230 = vmatpush.msra.mxu0 0.0
      %1231 = vmatpush.msra.mxu0 0.0
      %1232 = vmatpush.msra.mxu0 0.0
      %1233 = vmatpush.msra.mxu0 0.0
      %1234 = vmatpush.msra.mxu0 0.0
      %1235 = vmatpush.msra.mxu0 0.0
      %1236 = vmatpush.msra.mxu0 0.0
      %1237 = vmatpush.msra.mxu0 0.0
      %1238 = vmatpush.msra.mxu0 0.0
      %1239 = vmatpush.msra.mxu0 0.0
      %1240 = vmatpush.msra.mxu0 %v1196
      %1241 = vmatmul.f32.gmra.mxu0 %v1223
      %v1242 = vpop.f32.mrf.mxu0
      %v1243 = vadd.f32 0.0, %v1242
      %1244 = vdwg.mxu0
      %v1246 = vsel %vm881, %v1167, 0
      %1248 = vmatpush.msra.mxu0 0.0
      %1249 = vmatpush.msra.mxu0 0.0
      %1250 = vmatpush.msra.mxu0 0.0
      %1251 = vmatpush.msra.mxu0 0.0
      %1252 = vmatpush.msra.mxu0 0.0
      %1253 = vmatpush.msra.mxu0 0.0
      %1254 = vmatpush.msra.mxu0 0.0
      %1255 = vmatpush.msra.mxu0 0.0
      %1256 = vmatpush.msra.mxu0 0.0
      %1257 = vmatpush.msra.mxu0 0.0
      %1258 = vmatpush.msra.mxu0 0.0
      %1259 = vmatpush.msra.mxu0 0.0
      %1260 = vmatpush.msra.mxu0 0.0
      %1261 = vmatpush.msra.mxu0 0.0
      %1262 = vmatpush.msra.mxu0 0.0
      %1263 = vmatpush.msra.mxu0 %v1197
      %1264 = vmatmul.f32.gmra.mxu0 %v1246
      %v1265 = vpop.f32.mrf.mxu0
      %v1266 = vadd.f32 0.0, %v1265
      %1267 = vdwg.mxu0
      %v1269 = vsel %vm881, %v1193, 0
      %1271 = vmatpush.msra.mxu0 0.0
      %1272 = vmatpush.msra.mxu0 0.0
      %1273 = vmatpush.msra.mxu0 0.0
      %1274 = vmatpush.msra.mxu0 0.0
      %1275 = vmatpush.msra.mxu0 0.0
      %1276 = vmatpush.msra.mxu0 0.0
      %1277 = vmatpush.msra.mxu0 0.0
      %1278 = vmatpush.msra.mxu0 0.0
      %1279 = vmatpush.msra.mxu0 0.0
      %1280 = vmatpush.msra.mxu0 0.0
      %1281 = vmatpush.msra.mxu0 0.0
      %1282 = vmatpush.msra.mxu0 0.0
      %1283 = vmatpush.msra.mxu0 0.0
      %1284 = vmatpush.msra.mxu0 0.0
      %1285 = vmatpush.msra.mxu0 0.0
      %1286 = vmatpush.msra.mxu0 %v1198
      %1287 = vmatmul.f32.gmra.mxu0 %v1269
      %v1288 = vpop.f32.mrf.mxu0
      %v1289 = vadd.f32 0.0, %v1288
      %1290 = vdwg.mxu0
      %v1291 = vsel %vm800, %v1220, 0.0
      %v1292 = vsel %vm800, %v1243, 0.0
      %v1293 = vadd.f32 %v1291, %v1292
      %v1294 = vsel %vm800, %v1266, 0.0
      %v1295 = vadd.f32 %v1293, %v1294
      %v1296 = vsel %vm800, %v1289, 0.0
      %v1297 = vadd.f32 %v1295, %v1296
      %v1298 = vld [vmem:[%s11] sm:$0x1]
      %v1300 = vperm.slane %v1298, 0
      %v1302 = vadd.f32 %v1297, %v1300
      %v1303 = vadd.f32 %v1302, %v837
      %v1304 = vld [vmem:[%s12] sm:$0x1]
      %v1305 = vld [vmem:[%s13] sm:$0x1]
      %v1306 = vsel %vm800, %v1303, 0.0
      %1307 = vadd.xlane.f32.xlu0 %v1306
      %v1308 = vpop.xlane.xlu0 %1307
      %v1309 = vmul.f32 %v1308, %v810
      %v1310 = vsub.f32 %v1303, %v1309
      %v1311 = vmul.f32 %v1310, %v1310
      %v1312 = vsel %vm800, %v1311, 0.0
      %1313 = vadd.xlane.f32.xlu0 %v1312
      %v1314 = vpop.xlane.xlu0 %1313
      %v1315 = vmul.f32 %v1314, %v810
      %v1316 = vadd.f32 %v1315, 1e-12
      %v1317 = vrsqrt.pop %v1316
      %v1318 = vmul.f32 %v1317, %v1316
      %v1319 = vmul.f32 %v1318, %v1317
      %v1320 = vmul.f32 0.5, %v1319
      %v1321 = vsub.f32 1.5, %v1320
      %v1322 = vmul.f32 %v1317, %v1321
      %vm1323 = vweird.f32 %v1316
      %vm1324 = vweird.f32 %v1317
      %vm1325 = vmor %vm1323, %vm1324
      %v1326 = vsel %vm1325, %v1317, %v1322
      %v1327 = vmul.f32 %v1310, %v1326
      %v1329 = vperm.slane %v1304, 0
      %v1331 = vmul.f32 %v1327, %v1329
      %v1333 = vperm.slane %v1305, 0
      %v1335 = vadd.f32 %v1331, %v1333
      %v1336 = vld [vmem:[%s14] sm:$0xff]
      %v1337 = vld [vmem:[%s14 + $0x8] sm:$0xff]
      %v1338 = vld [vmem:[%s14 + $0x10] sm:$0xff]
      %v1339 = vld [vmem:[%s14 + $0x18] sm:$0xff]
      %v1340 = vld [vmem:[%s15] sm:$0x1]
      %v1342 = vperm.slane %v1340, 0
      %v1345 = vsel %vm800, %v1335, 0
      %1347 = vmatpush.msra.mxu0 0.0
      %1348 = vmatpush.msra.mxu0 0.0
      %1349 = vmatpush.msra.mxu0 0.0
      %1350 = vmatpush.msra.mxu0 0.0
      %1351 = vmatpush.msra.mxu0 0.0
      %1352 = vmatpush.msra.mxu0 0.0
      %1353 = vmatpush.msra.mxu0 0.0
      %1354 = vmatpush.msra.mxu0 0.0
      %1355 = vmatpush.msra.mxu0 0.0
      %1356 = vmatpush.msra.mxu0 0.0
      %1357 = vmatpush.msra.mxu0 0.0
      %1358 = vmatpush.msra.mxu0 0.0
      %1359 = vmatpush.msra.mxu0 %v1339
      %1360 = vmatpush.msra.mxu0 %v1338
      %1361 = vmatpush.msra.mxu0 %v1337
      %1362 = vmatpush.msra.mxu0 %v1336
      %1363 = vmatmul.f32.gmra.mxu0 %v1345
      %v1364 = vpop.f32.mrf.mxu0
      %v1365 = vadd.f32 %v1342, %v1364
      %1366 = vdwg.mxu0
      %v1367 = vmul.f32 %v1365, 0.5
      %v1368 = vmul.f32 %v1365, 0.044715
      %v1369 = vmul.f32 %v1368, %v1365
      %v1370 = vmul.f32 %v1369, %v1365
      %v1371 = vadd.f32 %v1365, %v1370
      %v1372 = vmul.f32 %v1371, 0.7978846
      %v1373 = vtanh.pop %v1372
      %v1374 = vadd.f32 %v1373, 1.0
      %v1375 = vmul.f32 %v1367, %v1374
      %v1376 = vld [vmem:[%s16] sm:$0xff]
      %v1377 = vld [vmem:[%s16 + $0x8] sm:$0xff]
      %v1378 = vld [vmem:[%s16 + $0x10] sm:$0xff]
      %v1379 = vld [vmem:[%s16 + $0x18] sm:$0xff]
      %v1380 = vld [vmem:[%s16 + $0x20] sm:$0xff]
      %v1381 = vld [vmem:[%s16 + $0x28] sm:$0xff]
      %v1382 = vld [vmem:[%s16 + $0x30] sm:$0xff]
      %v1383 = vld [vmem:[%s16 + $0x38] sm:$0xff]
      %v1384 = vld [vmem:[%s17] sm:$0x1]
      %v1386 = vperm.slane %v1384, 0
      %vm1388 = vcmask 523264
      %v1390 = vsel %vm1388, %v1375, 0
      %1392 = vmatpush.msra.mxu0 0.0
      %1393 = vmatpush.msra.mxu0 0.0
      %1394 = vmatpush.msra.mxu0 0.0
      %1395 = vmatpush.msra.mxu0 0.0
      %1396 = vmatpush.msra.mxu0 0.0
      %1397 = vmatpush.msra.mxu0 0.0
      %1398 = vmatpush.msra.mxu0 0.0
      %1399 = vmatpush.msra.mxu0 0.0
      %1400 = vmatpush.msra.mxu0 %v1383
      %1401 = vmatpush.msra.mxu0 %v1382
      %1402 = vmatpush.msra.mxu0 %v1381
      %1403 = vmatpush.msra.mxu0 %v1380
      %1404 = vmatpush.msra.mxu0 %v1379
      %1405 = vmatpush.msra.mxu0 %v1378
      %1406 = vmatpush.msra.mxu0 %v1377
      %1407 = vmatpush.msra.mxu0 %v1376
      %1408 = vmatmul.f32.gmra.mxu0 %v1390
      %v1409 = vpop.f32.mrf.mxu0
      %v1410 = vadd.f32 %v1386, %v1409
      %1411 = vdwg.mxu0
      %v1412 = vadd.f32 %v1410, %v1335
      %v1413 = vld [vmem:[%s18] sm:$0x1]
      %v1414 = vld [vmem:[%s19] sm:$0x1]
      %v1415 = vsel %vm800, %v1412, 0.0
      %1416 = vadd.xlane.f32.xlu0 %v1415
      %v1417 = vpop.xlane.xlu0 %1416
      %v1418 = vmul.f32 %v1417, %v810
      %v1419 = vsub.f32 %v1412, %v1418
      %v1420 = vmul.f32 %v1419, %v1419
      %v1421 = vsel %vm800, %v1420, 0.0
      %1422 = vadd.xlane.f32.xlu0 %v1421
      %v1423 = vpop.xlane.xlu0 %1422
      %v1424 = vmul.f32 %v1423, %v810
      %v1425 = vadd.f32 %v1424, 1e-12
      %v1426 = vrsqrt.pop %v1425
      %v1427 = vmul.f32 %v1426, %v1425
      %v1428 = vmul.f32 %v1427, %v1426
      %v1429 = vmul.f32 0.5, %v1428
      %v1430 = vsub.f32 1.5, %v1429
      %v1431 = vmul.f32 %v1426, %v1430
      %vm1432 = vweird.f32 %v1425
      %vm1433 = vweird.f32 %v1426
      %vm1434 = vmor %vm1432, %vm1433
      %v1435 = vsel %vm1434, %v1426, %v1431
      %v1436 = vmul.f32 %v1419, %v1435
      %v1438 = vperm.slane %v1413, 0
      %v1440 = vmul.f32 %v1436, %v1438
      %v1442 = vperm.slane %v1414, 0
      %v1444 = vadd.f32 %v1440, %v1442
      %s1445 = scalar_lea.vmem %s8, 32
      %v1446 = vld [vmem:[%s1445] sm:$0xff]
      %v1447 = vld [vmem:[%s1445 + $0x8] sm:$0xff]
      %v1448 = vld [vmem:[%s1445 + $0x10] sm:$0xff]
      %v1449 = vld [vmem:[%s1445 + $0x18] sm:$0xff]
      %s1450 = scalar_lea.vmem %s9, 1
      %v1451 = vld [vmem:[%s1450] sm:$0x1]
      %v1453 = vperm.slane %v1451, 0
      %v1456 = vsel %vm800, %v1444, 0
      %1458 = vmatpush.msra.mxu0 0.0
      %1459 = vmatpush.msra.mxu0 0.0
      %1460 = vmatpush.msra.mxu0 0.0
      %1461 = vmatpush.msra.mxu0 0.0
      %1462 = vmatpush.msra.mxu0 0.0
      %1463 = vmatpush.msra.mxu0 0.0
      %1464 = vmatpush.msra.mxu0 0.0
      %1465 = vmatpush.msra.mxu0 0.0
      %1466 = vmatpush.msra.mxu0 0.0
      %1467 = vmatpush.msra.mxu0 0.0
      %1468 = vmatpush.msra.mxu0 0.0
      %1469 = vmatpush.msra.mxu0 0.0
      %1470 = vmatpush.msra.mxu0 %v1449
      %1471 = vmatpush.msra.mxu0 %v1448
      %1472 = vmatpush.msra.mxu0 %v1447
      %1473 = vmatpush.msra.mxu0 %v1446
      %1474 = vmatmul.f32.gmra.mxu0 %v1456
      %v1475 = vpop.f32.mrf.mxu0
      %v1476 = vadd.f32 %v1453, %v1475
      %1477 = vdwg.mxu0
      %1479 = vrot.lane.b32.xlu0 %v1476, 120
      %v1480 = vpop.permute.xlu0 %1479
      %1481 = vrot.lane.b32.xlu0 %v1476, 112
      %v1482 = vpop.permute.xlu0 %1481
      %1483 = vrot.lane.b32.xlu0 %v1476, 104
      %v1484 = vpop.permute.xlu0 %1483
      %1485 = vrot.lane.b32.xlu0 %v1476, 96
      %v1486 = vpop.permute.xlu0 %1485
      %v1487 = vsel %vm881, %v1476, 0
      %v1489 = vsel %vm881, %v1486, 0
      %1491 = vmatpush.xpose.msra.mxu0 0.0
      %1492 = vmatpush.xpose.msra.mxu0 0.0
      %1493 = vmatpush.xpose.msra.mxu0 0.0
      %1494 = vmatpush.xpose.msra.mxu0 0.0
      %1495 = vmatpush.xpose.msra.mxu0 0.0
      %1496 = vmatpush.xpose.msra.mxu0 0.0
      %1497 = vmatpush.xpose.msra.mxu0 0.0
      %1498 = vmatpush.xpose.msra.mxu0 0.0
      %1499 = vmatpush.xpose.msra.mxu0 0.0
      %1500 = vmatpush.xpose.msra.mxu0 0.0
      %1501 = vmatpush.xpose.msra.mxu0 0.0
      %1502 = vmatpush.xpose.msra.mxu0 0.0
      %1503 = vmatpush.xpose.msra.mxu0 0.0
      %1504 = vmatpush.xpose.msra.mxu0 0.0
      %1505 = vmatpush.xpose.msra.mxu0 0.0
      %1506 = vmatpush.xpose.msra.mxu0 %v1489
      %1507 = vmatmul.f32.gmra.mxu0 %v1487
      %v1508 = vpop.f32.mrf.mxu0
      %v1509 = vadd.f32 0.0, %v1508
      %1510 = vdwg.mxu0
      %1511 = vrot.lane.b32.xlu0 %v1480, 96
      %v1512 = vpop.permute.xlu0 %1511
      %v1513 = vsel %vm881, %v1480, 0
      %v1515 = vsel %vm881, %v1512, 0
      %1517 = vmatpush.xpose.msra.mxu0 0.0
      %1518 = vmatpush.xpose.msra.mxu0 0.0
      %1519 = vmatpush.xpose.msra.mxu0 0.0
      %1520 = vmatpush.xpose.msra.mxu0 0.0
      %1521 = vmatpush.xpose.msra.mxu0 0.0
      %1522 = vmatpush.xpose.msra.mxu0 0.0
      %1523 = vmatpush.xpose.msra.mxu0 0.0
      %1524 = vmatpush.xpose.msra.mxu0 0.0
      %1525 = vmatpush.xpose.msra.mxu0 0.0
      %1526 = vmatpush.xpose.msra.mxu0 0.0
      %1527 = vmatpush.xpose.msra.mxu0 0.0
      %1528 = vmatpush.xpose.msra.mxu0 0.0
      %1529 = vmatpush.xpose.msra.mxu0 0.0
      %1530 = vmatpush.xpose.msra.mxu0 0.0
      %1531 = vmatpush.xpose.msra.mxu0 0.0
      %1532 = vmatpush.xpose.msra.mxu0 %v1515
      %1533 = vmatmul.f32.gmra.mxu0 %v1513
      %v1534 = vpop.f32.mrf.mxu0
      %v1535 = vadd.f32 0.0, %v1534
      %1536 = vdwg.mxu0
      %1537 = vrot.lane.b32.xlu0 %v1482, 96
      %v1538 = vpop.permute.xlu0 %1537
      %v1539 = vsel %vm881, %v1482, 0
      %v1541 = vsel %vm881, %v1538, 0
      %1543 = vmatpush.xpose.msra.mxu0 0.0
      %1544 = vmatpush.xpose.msra.mxu0 0.0
      %1545 = vmatpush.xpose.msra.mxu0 0.0
      %1546 = vmatpush.xpose.msra.mxu0 0.0
      %1547 = vmatpush.xpose.msra.mxu0 0.0
      %1548 = vmatpush.xpose.msra.mxu0 0.0
      %1549 = vmatpush.xpose.msra.mxu0 0.0
      %1550 = vmatpush.xpose.msra.mxu0 0.0
      %1551 = vmatpush.xpose.msra.mxu0 0.0
      %1552 = vmatpush.xpose.msra.mxu0 0.0
      %1553 = vmatpush.xpose.msra.mxu0 0.0
      %1554 = vmatpush.xpose.msra.mxu0 0.0
      %1555 = vmatpush.xpose.msra.mxu0 0.0
      %1556 = vmatpush.xpose.msra.mxu0 0.0
      %1557 = vmatpush.xpose.msra.mxu0 0.0
      %1558 = vmatpush.xpose.msra.mxu0 %v1541
      %1559 = vmatmul.f32.gmra.mxu0 %v1539
      %v1560 = vpop.f32.mrf.mxu0
      %v1561 = vadd.f32 0.0, %v1560
      %1562 = vdwg.mxu0
      %1563 = vrot.lane.b32.xlu0 %v1484, 96
      %v1564 = vpop.permute.xlu0 %1563
      %v1565 = vsel %vm881, %v1484, 0
      %v1567 = vsel %vm881, %v1564, 0
      %1569 = vmatpush.xpose.msra.mxu0 0.0
      %1570 = vmatpush.xpose.msra.mxu0 0.0
      %1571 = vmatpush.xpose.msra.mxu0 0.0
      %1572 = vmatpush.xpose.msra.mxu0 0.0
      %1573 = vmatpush.xpose.msra.mxu0 0.0
      %1574 = vmatpush.xpose.msra.mxu0 0.0
      %1575 = vmatpush.xpose.msra.mxu0 0.0
      %1576 = vmatpush.xpose.msra.mxu0 0.0
      %1577 = vmatpush.xpose.msra.mxu0 0.0
      %1578 = vmatpush.xpose.msra.mxu0 0.0
      %1579 = vmatpush.xpose.msra.mxu0 0.0
      %1580 = vmatpush.xpose.msra.mxu0 0.0
      %1581 = vmatpush.xpose.msra.mxu0 0.0
      %1582 = vmatpush.xpose.msra.mxu0 0.0
      %1583 = vmatpush.xpose.msra.mxu0 0.0
      %1584 = vmatpush.xpose.msra.mxu0 %v1567
      %1585 = vmatmul.f32.gmra.mxu0 %v1565
      %v1586 = vpop.f32.mrf.mxu0
      %v1587 = vadd.f32 0.0, %v1586
      %1588 = vdwg.mxu0
      %v1589 = vmul.f32 %v1509, 0.35355338
      %v1590 = vmul.f32 %v1535, 0.35355338
      %v1591 = vmul.f32 %v1561, 0.35355338
      %v1592 = vmul.f32 %v1587, 0.35355338
      %v1593 = vadd.f32 %v1589, %v989
      %v1594 = vadd.f32 %v1590, %v989
      %v1595 = vadd.f32 %v1591, %v989
      %v1596 = vadd.f32 %v1592, %v989
      %v1597 = vsel %vm881, %v1593, -inf
      %1598 = vmax.xlane.f32.xlu0 %v1597
      %v1599 = vpop.xlane.xlu0 %1598
      %v1600 = vsel %vm881, %v1594, -inf
      %1601 = vmax.xlane.f32.xlu0 %v1600
      %v1602 = vpop.xlane.xlu0 %1601
      %v1603 = vsel %vm881, %v1595, -inf
      %1604 = vmax.xlane.f32.xlu0 %v1603
      %v1605 = vpop.xlane.xlu0 %1604
      %v1606 = vsel %vm881, %v1596, -inf
      %1607 = vmax.xlane.f32.xlu0 %v1606
      %v1608 = vpop.xlane.xlu0 %1607
      %v1609 = vsub.f32 %v1593, %v1599
      %v1610 = vsub.f32 %v1594, %v1602
      %v1611 = vsub.f32 %v1595, %v1605
      %v1612 = vsub.f32 %v1596, %v1608
      %v1613 = vmul.f32 %v1609, 1.442695
      %v1614 = vpow.pop %v1613
      %v1615 = vmul.f32 %v1610, 1.442695
      %v1616 = vpow.pop %v1615
      %v1617 = vmul.f32 %v1611, 1.442695
      %v1618 = vpow.pop %v1617
      %v1619 = vmul.f32 %v1612, 1.442695
      %v1620 = vpow.pop %v1619
      %v1621 = vsel %vm881, %v1614, 0.0
      %1622 = vadd.xlane.f32.xlu0 %v1621
      %v1623 = vpop.xlane.xlu0 %1622
      %v1624 = vsel %vm881, %v1616, 0.0
      %1625 = vadd.xlane.f32.xlu0 %v1624
      %v1626 = vpop.xlane.xlu0 %1625
      %v1627 = vsel %vm881, %v1618, 0.0
      %1628 = vadd.xlane.f32.xlu0 %v1627
      %v1629 = vpop.xlane.xlu0 %1628
      %v1630 = vsel %vm881, %v1620, 0.0
      %1631 = vadd.xlane.f32.xlu0 %v1630
      %v1632 = vpop.xlane.xlu0 %1631
      %v1633 = vrcp.pop %v1623
      %v1634 = vmul.f32 %v1623, %v1633
      %v1635 = vsub.f32 1.0, %v1634
      %v1636 = vmul.f32 %v1633, %v1635
      %v1637 = vadd.f32 %v1633, %v1636
      %vm1638 = vweird.f32 %v1623
      %vm1639 = vweird.f32 %v1633
      %vm1640 = vmor %vm1638, %vm1639
      %v1641 = vsel %vm1640, %v1633, %v1637
      %v1642 = vand.u32 2147483647, %v1623
      %vm1643 = vcmp.eq.f32.partialorder %v1642, 8.507059e+37
      %v1644 = vand.u32 %v1623, 2147483648
      %v1645 = vor.u32 1.1754944e-38, %v1644
      %v1646 = vsel %vm1643, %v1645, %v1641
      %v1647 = vmul.f32 %v1614, %v1646
      %v1648 = vrcp.pop %v1626
      %v1649 = vmul.f32 %v1626, %v1648
      %v1650 = vsub.f32 1.0, %v1649
      %v1651 = vmul.f32 %v1648, %v1650
      %v1652 = vadd.f32 %v1648, %v1651
      %vm1653 = vweird.f32 %v1626
      %vm1654 = vweird.f32 %v1648
      %vm1655 = vmor %vm1653, %vm1654
      %v1656 = vsel %vm1655, %v1648, %v1652
      %v1657 = vand.u32 2147483647, %v1626
      %vm1658 = vcmp.eq.f32.partialorder %v1657, 8.507059e+37
      %v1659 = vand.u32 %v1626, 2147483648
      %v1660 = vor.u32 1.1754944e-38, %v1659
      %v1661 = vsel %vm1658, %v1660, %v1656
      %v1662 = vmul.f32 %v1616, %v1661
      %v1663 = vrcp.pop %v1629
      %v1664 = vmul.f32 %v1629, %v1663
      %v1665 = vsub.f32 1.0, %v1664
      %v1666 = vmul.f32 %v1663, %v1665
      %v1667 = vadd.f32 %v1663, %v1666
      %vm1668 = vweird.f32 %v1629
      %vm1669 = vweird.f32 %v1663
      %vm1670 = vmor %vm1668, %vm1669
      %v1671 = vsel %vm1670, %v1663, %v1667
      %v1672 = vand.u32 2147483647, %v1629
      %vm1673 = vcmp.eq.f32.partialorder %v1672, 8.507059e+37
      %v1674 = vand.u32 %v1629, 2147483648
      %v1675 = vor.u32 1.1754944e-38, %v1674
      %v1676 = vsel %vm1673, %v1675, %v1671
      %v1677 = vmul.f32 %v1618, %v1676
      %v1678 = vrcp.pop %v1632
      %v1679 = vmul.f32 %v1632, %v1678
      %v1680 = vsub.f32 1.0, %v1679
      %v1681 = vmul.f32 %v1678, %v1680
      %v1682 = vadd.f32 %v1678, %v1681
      %vm1683 = vweird.f32 %v1632
      %vm1684 = vweird.f32 %v1678
      %vm1685 = vmor %vm1683, %vm1684
      %v1686 = vsel %vm1685, %v1678, %v1682
      %v1687 = vand.u32 2147483647, %v1632
      %vm1688 = vcmp.eq.f32.partialorder %v1687, 8.507059e+37
      %v1689 = vand.u32 %v1632, 2147483648
      %v1690 = vor.u32 1.1754944e-38, %v1689
      %v1691 = vsel %vm1688, %v1690, %v1686
      %v1692 = vmul.f32 %v1620, %v1691
      %1693 = vrot.lane.b32.xlu0 %v1476, 64
      %v1694 = vpop.permute.xlu0 %1693
      %v1697 = vsel %vm881, %v1647, 0
      %1699 = vmatpush.msra.mxu0 0.0
      %1700 = vmatpush.msra.mxu0 0.0
      %1701 = vmatpush.msra.mxu0 0.0
      %1702 = vmatpush.msra.mxu0 0.0
      %1703 = vmatpush.msra.mxu0 0.0
      %1704 = vmatpush.msra.mxu0 0.0
      %1705 = vmatpush.msra.mxu0 0.0
      %1706 = vmatpush.msra.mxu0 0.0
      %1707 = vmatpush.msra.mxu0 0.0
      %1708 = vmatpush.msra.mxu0 0.0
      %1709 = vmatpush.msra.mxu0 0.0
      %1710 = vmatpush.msra.mxu0 0.0
      %1711 = vmatpush.msra.mxu0 0.0
      %1712 = vmatpush.msra.mxu0 0.0
      %1713 = vmatpush.msra.mxu0 0.0
      %1714 = vmatpush.msra.mxu0 %v1694
      %1715 = vmatmul.f32.gmra.mxu0 %v1697
      %v1716 = vpop.f32.mrf.mxu0
      %v1717 = vadd.f32 0.0, %v1716
      %1718 = vdwg.mxu0
      %1719 = vrot.lane.b32.xlu0 %v1480, 64
      %v1720 = vpop.permute.xlu0 %1719
      %v1723 = vsel %vm881, %v1662, 0
      %1725 = vmatpush.msra.mxu0 0.0
      %1726 = vmatpush.msra.mxu0 0.0
      %1727 = vmatpush.msra.mxu0 0.0
      %1728 = vmatpush.msra.mxu0 0.0
      %1729 = vmatpush.msra.mxu0 0.0
      %1730 = vmatpush.msra.mxu0 0.0
      %1731 = vmatpush.msra.mxu0 0.0
      %1732 = vmatpush.msra.mxu0 0.0
      %1733 = vmatpush.msra.mxu0 0.0
      %1734 = vmatpush.msra.mxu0 0.0
      %1735 = vmatpush.msra.mxu0 0.0
      %1736 = vmatpush.msra.mxu0 0.0
      %1737 = vmatpush.msra.mxu0 0.0
      %1738 = vmatpush.msra.mxu0 0.0
      %1739 = vmatpush.msra.mxu0 0.0
      %1740 = vmatpush.msra.mxu0 %v1720
      %1741 = vmatmul.f32.gmra.mxu0 %v1723
      %v1742 = vpop.f32.mrf.mxu0
      %v1743 = vadd.f32 0.0, %v1742
      %1744 = vdwg.mxu0
      %1745 = vrot.lane.b32.xlu0 %v1482, 64
      %v1746 = vpop.permute.xlu0 %1745
      %v1749 = vsel %vm881, %v1677, 0
      %1751 = vmatpush.msra.mxu0 0.0
      %1752 = vmatpush.msra.mxu0 0.0
      %1753 = vmatpush.msra.mxu0 0.0
      %1754 = vmatpush.msra.mxu0 0.0
      %1755 = vmatpush.msra.mxu0 0.0
      %1756 = vmatpush.msra.mxu0 0.0
      %1757 = vmatpush.msra.mxu0 0.0
      %1758 = vmatpush.msra.mxu0 0.0
      %1759 = vmatpush.msra.mxu0 0.0
      %1760 = vmatpush.msra.mxu0 0.0
      %1761 = vmatpush.msra.mxu0 0.0
      %1762 = vmatpush.msra.mxu0 0.0
      %1763 = vmatpush.msra.mxu0 0.0
      %1764 = vmatpush.msra.mxu0 0.0
      %1765 = vmatpush.msra.mxu0 0.0
      %1766 = vmatpush.msra.mxu0 %v1746
      %1767 = vmatmul.f32.gmra.mxu0 %v1749
      %v1768 = vpop.f32.mrf.mxu0
      %v1769 = vadd.f32 0.0, %v1768
      %1770 = vdwg.mxu0
      %1771 = vrot.lane.b32.xlu0 %v1484, 64
      %v1772 = vpop.permute.xlu0 %1771
      %v1775 = vsel %vm881, %v1692, 0
      %1777 = vmatpush.msra.mxu0 0.0
      %1778 = vmatpush.msra.mxu0 0.0
      %1779 = vmatpush.msra.mxu0 0.0
      %1780 = vmatpush.msra.mxu0 0.0
      %1781 = vmatpush.msra.mxu0 0.0
      %1782 = vmatpush.msra.mxu0 0.0
      %1783 = vmatpush.msra.mxu0 0.0
      %1784 = vmatpush.msra.mxu0 0.0
      %1785 = vmatpush.msra.mxu0 0.0
      %1786 = vmatpush.msra.mxu0 0.0
      %1787 = vmatpush.msra.mxu0 0.0
      %1788 = vmatpush.msra.mxu0 0.0
      %1789 = vmatpush.msra.mxu0 0.0
      %1790 = vmatpush.msra.mxu0 0.0
      %1791 = vmatpush.msra.mxu0 0.0
      %1792 = vmatpush.msra.mxu0 %v1772
      %1793 = vmatmul.f32.gmra.mxu0 %v1775
      %v1794 = vpop.f32.mrf.mxu0
      %v1795 = vadd.f32 0.0, %v1794
      %1796 = vdwg.mxu0
      %s1797 = scalar_lea.vmem %s10, 32
      %v1798 = vld [vmem:[%s1797] sm:$0xff]
      %v1799 = vld [vmem:[%s1797 + $0x8] sm:$0xff]
      %v1800 = vld [vmem:[%s1797 + $0x10] sm:$0xff]
      %v1801 = vld [vmem:[%s1797 + $0x18] sm:$0xff]
      %v1803 = vsel %vm881, %v1717, 0
      %1805 = vmatpush.msra.mxu0 0.0
      %1806 = vmatpush.msra.mxu0 0.0
      %1807 = vmatpush.msra.mxu0 0.0
      %1808 = vmatpush.msra.mxu0 0.0
      %1809 = vmatpush.msra.mxu0 0.0
      %1810 = vmatpush.msra.mxu0 0.0
      %1811 = vmatpush.msra.mxu0 0.0
      %1812 = vmatpush.msra.mxu0 0.0
      %1813 = vmatpush.msra.mxu0 0.0
      %1814 = vmatpush.msra.mxu0 0.0
      %1815 = vmatpush.msra.mxu0 0.0
      %1816 = vmatpush.msra.mxu0 0.0
      %1817 = vmatpush.msra.mxu0 0.0
      %1818 = vmatpush.msra.mxu0 0.0
      %1819 = vmatpush.msra.mxu0 0.0
      %1820 = vmatpush.msra.mxu0 %v1798
      %1821 = vmatmul.f32.gmra.mxu0 %v1803
      %v1822 = vpop.f32.mrf.mxu0
      %v1823 = vadd.f32 0.0, %v1822
      %1824 = vdwg.mxu0
      %v1826 = vsel %vm881, %v1743, 0
      %1828 = vmatpush.msra.mxu0 0.0
      %1829 = vmatpush.msra.mxu0 0.0
      %1830 = vmatpush.msra.mxu0 0.0
      %1831 = vmatpush.msra.mxu0 0.0
      %1832 = vmatpush.msra.mxu0 0.0
      %1833 = vmatpush.msra.mxu0 0.0
      %1834 = vmatpush.msra.mxu0 0.0
      %1835 = vmatpush.msra.mxu0 0.0
      %1836 = vmatpush.msra.mxu0 0.0
      %1837 = vmatpush.msra.mxu0 0.0
      %1838 = vmatpush.msra.mxu0 0.0
      %1839 = vmatpush.msra.mxu0 0.0
      %1840 = vmatpush.msra.mxu0 0.0
      %1841 = vmatpush.msra.mxu0 0.0
      %1842 = vmatpush.msra.mxu0 0.0
      %1843 = vmatpush.msra.mxu0 %v1799
      %1844 = vmatmul.f32.gmra.mxu0 %v1826
      %v1845 = vpop.f32.mrf.mxu0
      %v1846 = vadd.f32 0.0, %v1845
      %1847 = vdwg.mxu0
      %v1849 = vsel %vm881, %v1769, 0
      %1851 = vmatpush.msra.mxu0 0.0
      %1852 = vmatpush.msra.mxu0 0.0
      %1853 = vmatpush.msra.mxu0 0.0
      %1854 = vmatpush.msra.mxu0 0.0
      %1855 = vmatpush.msra.mxu0 0.0
      %1856 = vmatpush.msra.mxu0 0.0
      %1857 = vmatpush.msra.mxu0 0.0
      %1858 = vmatpush.msra.mxu0 0.0
      %1859 = vmatpush.msra.mxu0 0.0
      %1860 = vmatpush.msra.mxu0 0.0
      %1861 = vmatpush.msra.mxu0 0.0
      %1862 = vmatpush.msra.mxu0 0.0
      %1863 = vmatpush.msra.mxu0 0.0
      %1864 = vmatpush.msra.mxu0 0.0
      %1865 = vmatpush.msra.mxu0 0.0
      %1866 = vmatpush.msra.mxu0 %v1800
      %1867 = vmatmul.f32.gmra.mxu0 %v1849
      %v1868 = vpop.f32.mrf.mxu0
      %v1869 = vadd.f32 0.0, %v1868
      %1870 = vdwg.mxu0
      %v1872 = vsel %vm881, %v1795, 0
      %1874 = vmatpush.msra.mxu0 0.0
      %1875 = vmatpush.msra.mxu0 0.0
      %1876 = vmatpush.msra.mxu0 0.0
      %1877 = vmatpush.msra.mxu0 0.0
      %1878 = vmatpush.msra.mxu0 0.0
      %1879 = vmatpush.msra.mxu0 0.0
      %1880 = vmatpush.msra.mxu0 0.0
      %1881 = vmatpush.msra.mxu0 0.0
      %1882 = vmatpush.msra.mxu0 0.0
      %1883 = vmatpush.msra.mxu0 0.0
      %1884 = vmatpush.msra.mxu0 0.0
      %1885 = vmatpush.msra.mxu0 0.0
      %1886 = vmatpush.msra.mxu0 0.0
      %1887 = vmatpush.msra.mxu0 0.0
      %1888 = vmatpush.msra.mxu0 0.0
      %1889 = vmatpush.msra.mxu0 %v1801
      %1890 = vmatmul.f32.gmra.mxu0 %v1872
      %v1891 = vpop.f32.mrf.mxu0
      %v1892 = vadd.f32 0.0, %v1891
      %1893 = vdwg.mxu0
      %v1894 = vsel %vm800, %v1823, 0.0
      %v1895 = vsel %vm800, %v1846, 0.0
      %v1896 = vadd.f32 %v1894, %v1895
      %v1897 = vsel %vm800, %v1869, 0.0
      %v1898 = vadd.f32 %v1896, %v1897
      %v1899 = vsel %vm800, %v1892, 0.0
      %v1900 = vadd.f32 %v1898, %v1899
      %s1901 = scalar_lea.vmem %s11, 1
      %v1902 = vld [vmem:[%s1901] sm:$0x1]
      %v1904 = vperm.slane %v1902, 0
      %v1906 = vadd.f32 %v1900, %v1904
      %v1907 = vadd.f32 %v1906, %v1444
      %s1908 = scalar_lea.vmem %s12, 1
      %v1909 = vld [vmem:[%s1908] sm:$0x1]
      %s1910 = scalar_lea.vmem %s13, 1
      %v1911 = vld [vmem:[%s1910] sm:$0x1]
      %v1912 = vsel %vm800, %v1907, 0.0
      %1913 = vadd.xlane.f32.xlu0 %v1912
      %v1914 = vpop.xlane.xlu0 %1913
      %v1915 = vmul.f32 %v1914, %v810
      %v1916 = vsub.f32 %v1907, %v1915
      %v1917 = vmul.f32 %v1916, %v1916
      %v1918 = vsel %vm800, %v1917, 0.0
      %1919 = vadd.xlane.f32.xlu0 %v1918
      %v1920 = vpop.xlane.xlu0 %1919
      %v1921 = vmul.f32 %v1920, %v810
      %v1922 = vadd.f32 %v1921, 1e-12
      %v1923 = vrsqrt.pop %v1922
      %v1924 = vmul.f32 %v1923, %v1922
      %v1925 = vmul.f32 %v1924, %v1923
      %v1926 = vmul.f32 0.5, %v1925
      %v1927 = vsub.f32 1.5, %v1926
      %v1928 = vmul.f32 %v1923, %v1927
      %vm1929 = vweird.f32 %v1922
      %vm1930 = vweird.f32 %v1923
      %vm1931 = vmor %vm1929, %vm1930
      %v1932 = vsel %vm1931, %v1923, %v1928
      %v1933 = vmul.f32 %v1916, %v1932
      %v1935 = vperm.slane %v1909, 0
      %v1937 = vmul.f32 %v1933, %v1935
      %v1939 = vperm.slane %v1911, 0
      %v1941 = vadd.f32 %v1937, %v1939
      %s1942 = scalar_lea.vmem %s14, 32
      %v1943 = vld [vmem:[%s1942] sm:$0xff]
      %v1944 = vld [vmem:[%s1942 + $0x8] sm:$0xff]
      %v1945 = vld [vmem:[%s1942 + $0x10] sm:$0xff]
      %v1946 = vld [vmem:[%s1942 + $0x18] sm:$0xff]
      %s1947 = scalar_lea.vmem %s15, 1
      %v1948 = vld [vmem:[%s1947] sm:$0x1]
      %v1950 = vperm.slane %v1948, 0
      %v1953 = vsel %vm800, %v1941, 0
      %1955 = vmatpush.msra.mxu0 0.0
      %1956 = vmatpush.msra.mxu0 0.0
      %1957 = vmatpush.msra.mxu0 0.0
      %1958 = vmatpush.msra.mxu0 0.0
      %1959 = vmatpush.msra.mxu0 0.0
      %1960 = vmatpush.msra.mxu0 0.0
      %1961 = vmatpush.msra.mxu0 0.0
      %1962 = vmatpush.msra.mxu0 0.0
      %1963 = vmatpush.msra.mxu0 0.0
      %1964 = vmatpush.msra.mxu0 0.0
      %1965 = vmatpush.msra.mxu0 0.0
      %1966 = vmatpush.msra.mxu0 0.0
      %1967 = vmatpush.msra.mxu0 %v1946
      %1968 = vmatpush.msra.mxu0 %v1945
      %1969 = vmatpush.msra.mxu0 %v1944
      %1970 = vmatpush.msra.mxu0 %v1943
      %1971 = vmatmul.f32.gmra.mxu0 %v1953
      %v1972 = vpop.f32.mrf.mxu0
      %v1973 = vadd.f32 %v1950, %v1972
      %1974 = vdwg.mxu0
      %v1975 = vmul.f32 %v1973, 0.5
      %v1976 = vmul.f32 %v1973, 0.044715
      %v1977 = vmul.f32 %v1976, %v1973
      %v1978 = vmul.f32 %v1977, %v1973
      %v1979 = vadd.f32 %v1973, %v1978
      %v1980 = vmul.f32 %v1979, 0.7978846
      %v1981 = vtanh.pop %v1980
      %v1982 = vadd.f32 %v1981, 1.0
      %v1983 = vmul.f32 %v1975, %v1982
      %s1984 = scalar_lea.vmem %s16, 64
      %v1985 = vld [vmem:[%s1984] sm:$0xff]
      %v1986 = vld [vmem:[%s1984 + $0x8] sm:$0xff]
      %v1987 = vld [vmem:[%s1984 + $0x10] sm:$0xff]
      %v1988 = vld [vmem:[%s1984 + $0x18] sm:$0xff]
      %v1989 = vld [vmem:[%s1984 + $0x20] sm:$0xff]
      %v1990 = vld [vmem:[%s1984 + $0x28] sm:$0xff]
      %v1991 = vld [vmem:[%s1984 + $0x30] sm:$0xff]
      %v1992 = vld [vmem:[%s1984 + $0x38] sm:$0xff]
      %s1993 = scalar_lea.vmem %s17, 1
      %v1994 = vld [vmem:[%s1993] sm:$0x1]
      %v1996 = vperm.slane %v1994, 0
      %v1999 = vsel %vm1388, %v1983, 0
      %2001 = vmatpush.msra.mxu0 0.0
      %2002 = vmatpush.msra.mxu0 0.0
      %2003 = vmatpush.msra.mxu0 0.0
      %2004 = vmatpush.msra.mxu0 0.0
      %2005 = vmatpush.msra.mxu0 0.0
      %2006 = vmatpush.msra.mxu0 0.0
      %2007 = vmatpush.msra.mxu0 0.0
      %2008 = vmatpush.msra.mxu0 0.0
      %2009 = vmatpush.msra.mxu0 %v1992
      %2010 = vmatpush.msra.mxu0 %v1991
      %2011 = vmatpush.msra.mxu0 %v1990
      %2012 = vmatpush.msra.mxu0 %v1989
      %2013 = vmatpush.msra.mxu0 %v1988
      %2014 = vmatpush.msra.mxu0 %v1987
      %2015 = vmatpush.msra.mxu0 %v1986
      %2016 = vmatpush.msra.mxu0 %v1985
      %2017 = vmatmul.f32.gmra.mxu0 %v1999
      %v2018 = vpop.f32.mrf.mxu0
      %v2019 = vadd.f32 %v1996, %v2018
      %2020 = vdwg.mxu0
      %v2021 = vadd.f32 %v2019, %v1941
      %s2022 = scalar_lea.vmem %s18, 1
      %v2023 = vld [vmem:[%s2022] sm:$0x1]
      %s2024 = scalar_lea.vmem %s19, 1
      %v2025 = vld [vmem:[%s2024] sm:$0x1]
      %v2026 = vsel %vm800, %v2021, 0.0
      %2027 = vadd.xlane.f32.xlu0 %v2026
      %v2028 = vpop.xlane.xlu0 %2027
      %v2029 = vmul.f32 %v2028, %v810
      %v2030 = vsub.f32 %v2021, %v2029
      %v2031 = vmul.f32 %v2030, %v2030
      %v2032 = vsel %vm800, %v2031, 0.0
      %2033 = vadd.xlane.f32.xlu0 %v2032
      %v2034 = vpop.xlane.xlu0 %2033
      %v2035 = vmul.f32 %v2034, %v810
      %v2036 = vadd.f32 %v2035, 1e-12
      %v2037 = vrsqrt.pop %v2036
      %v2038 = vmul.f32 %v2037, %v2036
      %v2039 = vmul.f32 %v2038, %v2037
      %v2040 = vmul.f32 0.5, %v2039
      %v2041 = vsub.f32 1.5, %v2040
      %v2042 = vmul.f32 %v2037, %v2041
      %vm2043 = vweird.f32 %v2036
      %vm2044 = vweird.f32 %v2037
      %vm2045 = vmor %vm2043, %vm2044
      %v2046 = vsel %vm2045, %v2037, %v2042
      %v2047 = vmul.f32 %v2030, %v2046
      %v2049 = vperm.slane %v2023, 0
      %v2051 = vmul.f32 %v2047, %v2049
      %v2053 = vperm.slane %v2025, 0
      %v2055 = vadd.f32 %v2051, %v2053
      %v2056 = vld [vmem:[%s20] sm:$0xff]
      %v2057 = vld [vmem:[%s20 + $0x8] sm:$0xff]
      %v2058 = vld [vmem:[%s20 + $0x10] sm:$0xff]
      %v2059 = vld [vmem:[%s20 + $0x18] sm:$0xff]
      %v2060 = vld [vmem:[%s21] sm:$0x1]
      %v2062 = vperm.slane %v2060, 0
      %v2065 = vsel %vm800, %v2055, 0
      %2067 = vmatpush.msra.mxu0 0.0
      %2068 = vmatpush.msra.mxu0 0.0
      %2069 = vmatpush.msra.mxu0 0.0
      %2070 = vmatpush.msra.mxu0 0.0
      %2071 = vmatpush.msra.mxu0 0.0
      %2072 = vmatpush.msra.mxu0 0.0
      %2073 = vmatpush.msra.mxu0 0.0
      %2074 = vmatpush.msra.mxu0 0.0
      %2075 = vmatpush.msra.mxu0 0.0
      %2076 = vmatpush.msra.mxu0 0.0
      %2077 = vmatpush.msra.mxu0 0.0
      %2078 = vmatpush.msra.mxu0 0.0
      %2079 = vmatpush.msra.mxu0 %v2059
      %2080 = vmatpush.msra.mxu0 %v2058
      %2081 = vmatpush.msra.mxu0 %v2057
      %2082 = vmatpush.msra.mxu0 %v2056
      %2083 = vmatmul.f32.gmra.mxu0 %v2065
      %v2084 = vpop.f32.mrf.mxu0
      %v2085 = vadd.f32 %v2062, %v2084
      %2086 = vdwg.mxu0
      %2087 = vst [vmem:[%s709] sm:$0xff] %v2085
      %p2088 = scmp.lt.s32.totalorder %s33, 1
      %s2089 = scalar_select %p2088, %s33, 1
      %s2090 = smul.addr %s2089, 8
      %s2091 = scalar_lea.vmem %s22, %s2090
      // Predicated region
      $region109: #{bert_mrc_forward.1} parent=107 // pred_check
        %p2092 = pneg %p528
      $region110: #{bert_mrc_forward.1} parent=107 // pred_check_branch
        %2094 = sbr.rel (%p2092) target = $region112
      $region111: #{bert_mrc_forward.1} parent=107 // pred_region
        _
      $region112: #{bert_mrc_forward.1} parent=107 // pred_fallthru
        _
    $region108: #{bert_mrc_forward.1} parent=5 // pred_fallthru
      _
    %p2095 = scmp.le.s32.totalorder 2, %s28
    // Predicated region
    $region113: #{bert_mrc_forward.1} parent=5 // pred_check
      %p2096 = pneg %p2095
    $region114: #{bert_mrc_forward.1} parent=5 // pred_check_branch
      %2098 = sbr.rel (%p2096) target = $region116
    $region115: #{bert_mrc_forward.1} parent=5 // pred_region
      %s2099 = ssub.s32 %s28, 2
      // Predicated region
      $region117: #{bert_mrc_forward.1} parent=115 // pred_check
        %p2100 = pneg %p534
      $region118: #{bert_mrc_forward.1} parent=115 // pred_check_branch
        %2102 = sbr.rel (%p2100) target = $region120
      $region119: #{bert_mrc_forward.1} parent=115 // pred_region
        %p2103 = scmp.lt.s32.totalorder %s34, 1
        %s2104 = scalar_select %p2103, %s34, 1
        %s2105 = smul.addr %s2104, 8
        %s2106 = scalar_lea.vmem %s22, %s2105
      $region120: #{bert_mrc_forward.1} parent=115 // pred_fallthru
        _
    $region116: #{bert_mrc_forward.1} parent=5 // pred_fallthru
      _
  $region6: #{bert_mrc_forward.1} parent=0 // loop_footer
    %s32 = sadd.s32 1, %s28
  $region7: #{bert_mrc_forward.1} parent=0 // loop_footer_branch
    %27 = sbr.rel target = $region3
  $region8: #{bert_mrc_forward.1} parent=0 // loop_exit
    _

</llo_original>
